<compile_context>
chip_gen: v6e
topology: v6e:2x2x1
jax: 0.10.0
libtpu: 0.0.40
codegen_flags: <defaults>
</compile_context>

<pallas_src>
import functools

import jax
import jax.numpy as jnp
from jax.experimental import pallas as pl
from jax.experimental.pallas import tpu as pltpu


def _round_up(x: int, m: int) -> int:
    return (x + m - 1) // m * m


def _embedding_max_norm(table, max_norm=5.0, eps=1e-7):
    """Functional equivalent of nn.Embedding(max_norm=...) row renormalization."""
    norms = jnp.linalg.norm(table, axis=-1, keepdims=True)
    scale = jnp.minimum(1.0, max_norm / jnp.maximum(norms, eps))
    return table * scale


# ----------------------------------------------------------------------------- kernel
def cnn_nlp_kernel(x_ref, w_ref, b_ref, mask_ref, fcw_ref, fcb_ref, out_ref, im_ref):
    """Fused conv1d (all banks, single matmul) -> bias -> ReLU -> masked max -> linear.

    x_ref   : (TB, L_pad, E)      bf16 embedded tokens (time zero-padded by k_pad-1)
    w_ref   : (k_pad*E, Fp)       bf16 packed conv weights (taps >= k_branch are zero)
    b_ref   : (1, Fp)             f32  packed conv bias
    mask_ref: (L, Fp)             f32  1.0 where the time position is valid per column
    fcw_ref : (Fp, Cp)            bf16 lane-padded FC weight
    fcb_ref : (1, Cp)             f32  lane-padded FC bias
    out_ref : (TB, Cp)            f32  padded logits
    im_ref  : (TB, L, k_pad*E)    bf16 VMEM scratch: im2col LHS
    """
    tb, _, e = x_ref.shape
    ke, fp = w_ref.shape
    l = mask_ref.shape[0]
    k_pad = ke // e

    # Build the im2col LHS once: im[b, t, j*E:(j+1)*E] = x[b, t+j, :]
    for j in range(k_pad):                                    # k_pad static -> unrolled
        im_ref[:, :, j * e:(j + 1) * e] = x_ref[:, j:j + l, :]

    # ONE wide MXU matmul: contraction K = k_pad*E, f32 accumulation.
    acc = jnp.dot(im_ref[...].reshape(tb * l, ke), w_ref[...],
                  preferred_element_type=jnp.float32)         # (TB*L, Fp)

    acc = acc.reshape(tb, l, fp) + b_ref[...].reshape(1, 1, fp)   # bias
    acc = jnp.maximum(acc, 0.0)                                   # ReLU
    # zero positions t > L - k_branch (ReLU output >= 0, so 0 never wins the max)
    acc = acc * mask_ref[...].reshape(1, l, fp)
    pooled = jnp.max(acc, axis=1)                                 # (TB, Fp)

    # TODO(synk): nn.Dropout(p=0.5) omitted — inference/eval semantics (identity).
    out_ref[...] = (jnp.dot(pooled.astype(fcw_ref.dtype), fcw_ref[...],
                            preferred_element_type=jnp.float32)
                    + fcb_ref[...])


# ------------------------------------------------------------------- parameter packing
def pack_cnn_nlp_params(emb_table, filter_sizes, num_filters, conv_ws, conv_bs,
                        fc_w, fc_b, max_len):
    """One-time (per-parameter-set) packing; hoisted out of the forward path.

    emb_table: (V, E) f32       conv_ws: list of (F_i, E, k_i) f32 (PyTorch layout)
    conv_bs  : list of (F_i,)   fc_w: (C, sum F) f32   fc_b: (C,) f32
    """
    E = emb_table.shape[1]
    C = fc_w.shape[0]
    sum_f = sum(num_filters)
    k_max = max(filter_sizes)
    L = max_len
    assert L >= k_max, "sentence length must be >= largest filter size"

    # Pad the tap count so K = k_pad*E is a multiple of 128 (full MXU depth), but only
    # when that costs at most a few extra zero taps (e.g. E=32: 5 -> 8 taps, K=256).
    k_pad = k_max
    for k in range(k_max, k_max + 8):
        if (k * E) % 128 == 0:
            k_pad = k
            break

    fp = _round_up(sum_f, 128)              # lane-padded fused filter count
    cp = _round_up(C, 128)                  # lane-padded output classes
    l_pad = _round_up(L + k_pad - 1, 16)    # bf16 packs 16 sublanes per vreg

    # pack the conv banks into one lane-padded weight per tap, then flatten taps into K
    w_packed = jnp.zeros((k_pad, E, fp), jnp.float32)
    b_packed = jnp.zeros((1, fp), jnp.float32)
    col_k = jnp.ones((fp,), jnp.float32)    # per-column filter size (1 => pad col)
    col = 0
    for fs, nf, w, b in zip(filter_sizes, num_filters, conv_ws, conv_bs):
        # PyTorch (F, E, k) -> (k, E, F)
        w_packed = w_packed.at[:fs, :, col:col + nf].set(jnp.transpose(w, (2, 1, 0)))
        b_packed = b_packed.at[0, col:col + nf].set(b)
        col_k = col_k.at[col:col + nf].set(float(fs))
        col += nf

    # valid time positions per column: t <= L - k_branch
    t_idx = jnp.arange(L, dtype=jnp.float32)[:, None]
    mask = (t_idx < (L - col_k[None, :] + 1.0)).astype(jnp.float32)   # (L, Fp)

    fc_w_p = jnp.zeros((fp, cp), jnp.float32).at[:sum_f, :C].set(fc_w.T)
    fc_b_p = jnp.zeros((1, cp), jnp.float32).at[0, :C].set(fc_b)

    table_bf16 = _embedding_max_norm(emb_table, 5.0).astype(jnp.bfloat16)

    return dict(
        table=table_bf16,
        w2d=w_packed.reshape(k_pad * E, fp).astype(jnp.bfloat16),
        b=b_packed,
        mask=mask,
        fcw=fc_w_p.astype(jnp.bfloat16),
        fcb=fc_b_p,
        E=E, C=C, L=L, l_pad=l_pad, k_pad=k_pad, fp=fp, cp=cp,
    )


# -------------------------------------------------------------------------- forward
def cnn_nlp_forward(input_ids, params, *, batch_tile=128):
    """input_ids: (B, L) int32 -> (B, C) f32 logits."""
    B, L = input_ids.shape
    assert L == params["L"], "packed parameters were built for a different max_len"
    E, C = params["E"], params["C"]
    l_pad, k_pad = params["l_pad"], params["k_pad"]
    fp, cp = params["fp"], params["cp"]

    # Batch tiling: never exceed the (rounded-up) batch; prefer >= 2 grid steps so
    # v7x's second TensorCore gets work under dimension_semantics=("parallel",).
    tb = min(batch_tile, _round_up(B, 8))
    if _round_up(B, tb) // tb < 2 and tb >= 16:
        tb = _round_up(tb // 2, 8)
    B_pad = _round_up(B, tb)
    grid = (B_pad // tb,)

    # embedding lookup: gather directly into a pre-padded bf16 buffer (no second pad)
    x = jnp.zeros((B_pad, l_pad, E), jnp.bfloat16)
    x = x.at[:B, :L, :].set(params["table"][input_ids])

    # explicit scoped-VMEM budget (double-buffered tiles + resident weights + scratch)
    vmem_est = (
        2 * tb * l_pad * E * 2            # activation tile, double-buffered (bf16)
        + 2 * tb * cp * 4                 # output tile, double-buffered (f32)
        + k_pad * E * fp * 2              # conv weight (bf16)
        + fp * cp * 2                     # FC weight (bf16)
        + (fp + cp) * 4 + L * fp * 4      # biases + mask (f32)
        + tb * L * k_pad * E * 2          # im2col scratch (bf16)
        + tb * L * fp * 4                 # f32 conv activations
    )
    vmem_limit = int(min(64 << 20, max(32 << 20, 2 * vmem_est)))

    out = pl.pallas_call(
        cnn_nlp_kernel,
        out_shape=jax.ShapeDtypeStruct((B_pad, cp), jnp.float32),
        grid_spec=pltpu.PrefetchScalarGridSpec(
            num_scalar_prefetch=0,
            grid=grid,
            in_specs=[
                # activation tile: pipelined over the batch grid
                pl.BlockSpec((tb, l_pad, E), lambda i: (i, 0, 0)),
                # weights / bias / mask: constant index_map -> VMEM-resident
                pl.BlockSpec((k_pad * E, fp), lambda i: (0, 0)),
                pl.BlockSpec((1, fp), lambda i: (0, 0)),
                pl.BlockSpec((L, fp), lambda i: (0, 0)),
                pl.BlockSpec((fp, cp), lambda i: (0, 0)),
                pl.BlockSpec((1, cp), lambda i: (0, 0)),
            ],
            out_specs=pl.BlockSpec((tb, cp), lambda i: (i, 0)),
            scratch_shapes=[pltpu.VMEM((tb, L, k_pad * E), jnp.bfloat16)],
        ),
        compiler_params=pltpu.CompilerParams(
            dimension_semantics=("parallel",),
            vmem_limit_bytes=vmem_limit),
    )(x, params["w2d"], params["b"], params["mask"], params["fcw"], params["fcb"])

    return out[:B, :C]


# ------------------------------------------------------------------------ reference
def reference_forward(input_ids, emb_table, filter_sizes, conv_ws, conv_bs, fc_w, fc_b):
    """Pure-JAX f32 reference matching the PyTorch module's forward."""
    table = _embedding_max_norm(emb_table, 5.0)
    x = table[input_ids].astype(jnp.float32)                # (B, L, E)
    L = x.shape[1]
    feats = []
    for fs, w, b in zip(filter_sizes, conv_ws, conv_bs):    # w: (F, E, fs)
        l_out = L - fs + 1
        conv = jnp.stack(
            [jnp.einsum('bke,fek->bf', x[:, t:t + fs, :], w) for t in range(l_out)],
            axis=1) + b[None, None, :]                      # (B, L_out, F)
        feats.append(jnp.max(jax.nn.relu(conv), axis=1))
    x_fc = jnp.concatenate(feats, axis=-1)
    return x_fc @ fc_w.T + fc_b[None, :]


if __name__ == "__main__":
    # Small, deterministic configuration consistent with the module's __init__.
    B, L = 16, 16           # batch, max sentence length
    V, E = 64, 32           # vocab_size, embed_dim
    filter_sizes = [3, 4, 5]
    num_filters = [8, 8, 8]
    C = 2                   # dim_output

    key = jax.random.PRNGKey(0)
    ks = jax.random.split(key, 12)

    input_ids = jax.random.randint(ks[0], (B, L), 0, V, dtype=jnp.int32)

    # Embedding table; padding_idx=0 row zeroed (nn.Embedding(padding_idx=0)).
    emb_table = jax.random.normal(ks[1], (V, E), jnp.float32)
    emb_table = emb_table.at[0].set(0.0)

    # Conv1d params in PyTorch layout (F, E, k); Linear in PyTorch layout (C, sumF).
    conv_ws, conv_bs = [], []
    for i, (fs, nf) in enumerate(zip(filter_sizes, num_filters)):
        conv_ws.append(jax.random.normal(ks[2 + i], (nf, E, fs), jnp.float32) * 0.2)
        conv_bs.append(jax.random.normal(ks[5 + i], (nf,), jnp.float32) * 0.1)
    fc_w = jax.random.normal(ks[8], (C, sum(num_filters)), jnp.float32) * 0.2
    fc_b = jax.random.normal(ks[9], (C,), jnp.float32) * 0.1

    # Parameter packing hoisted out of the forward path (done once, reused per call).
    params = pack_cnn_nlp_params(emb_table, filter_sizes, num_filters,
                                 conv_ws, conv_bs, fc_w, fc_b, max_len=L)

    fwd = jax.jit(lambda ids: cnn_nlp_forward(ids, params, batch_tile=128))
    logits = fwd(input_ids)
    jax.block_until_ready(logits)

    ref = reference_forward(input_ids, emb_table, filter_sizes, conv_ws, conv_bs,
                            fc_w, fc_b)

    assert logits.shape == (B, C) and logits.dtype == jnp.float32
    # bf16 inputs / f32 accumulation vs f32 reference.
    assert jnp.allclose(logits, ref, atol=1e-1, rtol=5e-2), (logits, ref)
    print("KERNEL_OK")
</pallas_src>

<mosaic_0001>
module attributes {stable_mosaic.version = 11 : i64} {
  func.func @cnn_nlp_kernel(%arg0: i32, %arg1: memref<8x32x32xbf16, #tpu.memory_space<vmem>>, %arg2: memref<256x128xbf16, #tpu.memory_space<vmem>>, %arg3: memref<1x128xf32, #tpu.memory_space<vmem>>, %arg4: memref<16x128xf32, #tpu.memory_space<vmem>>, %arg5: memref<128x128xbf16, #tpu.memory_space<vmem>>, %arg6: memref<1x128xf32, #tpu.memory_space<vmem>>, %arg7: memref<8x128xf32, #tpu.memory_space<vmem>>, %arg8: memref<8x16x256xbf16, #tpu.memory_space<vmem>>) attributes {dimension_semantics = [#tpu.dimension_semantics<parallel>], iteration_bounds = array<i64: 2>, scalar_prefetch = 0 : i64, scratch_operands = 1 : i64, tpu.core_type = #tpu.core_type<tc>, window_params = [{transform_indices = @transform_0, window_bounds = array<i64: 8, 32, 32>}, {pipeline_mode = #tpu.pipeline_mode<synchronous>, transform_indices = @transform_1, window_bounds = array<i64: 256, 128>}, {pipeline_mode = #tpu.pipeline_mode<synchronous>, transform_indices = @transform_2, window_bounds = array<i64: 1, 128>}, {pipeline_mode = #tpu.pipeline_mode<synchronous>, transform_indices = @transform_3, window_bounds = array<i64: 16, 128>}, {pipeline_mode = #tpu.pipeline_mode<synchronous>, transform_indices = @transform_4, window_bounds = array<i64: 128, 128>}, {pipeline_mode = #tpu.pipeline_mode<synchronous>, transform_indices = @transform_5, window_bounds = array<i64: 1, 128>}, {transform_indices = @transform_6, window_bounds = array<i64: 8, 128>}]} {
    %c0 = arith.constant 0 : index
    %c0_0 = arith.constant 0 : index
    %c0_1 = arith.constant 0 : index
    %0 = vector.load %arg1[%c0, %c0_0, %c0_1] : memref<8x32x32xbf16, #tpu.memory_space<vmem>>, vector<8x16x32xbf16>
    %c0_2 = arith.constant 0 : index
    %c0_3 = arith.constant 0 : index
    %c0_4 = arith.constant 0 : index
    %1 = vector.load %arg8[%c0_2, %c0_3, %c0_4] : memref<8x16x256xbf16, #tpu.memory_space<vmem>>, vector<8x16x32xbf16>
    tpu.vector_store %arg8[%c0_2, %c0_3, %c0_4], %0 {strides = array<i32>} : memref<8x16x256xbf16, #tpu.memory_space<vmem>>, vector<8x16x32xbf16>,
    %c0_5 = arith.constant 0 : index
    %c1 = arith.constant 1 : index
    %c0_6 = arith.constant 0 : index
    %2 = vector.load %arg1[%c0_5, %c1, %c0_6] : memref<8x32x32xbf16, #tpu.memory_space<vmem>>, vector<8x16x32xbf16>
    %c0_7 = arith.constant 0 : index
    %c0_8 = arith.constant 0 : index
    %c32 = arith.constant 32 : index
    %3 = vector.load %arg8[%c0_7, %c0_8, %c32] : memref<8x16x256xbf16, #tpu.memory_space<vmem>>, vector<8x16x32xbf16>
    tpu.vector_store %arg8[%c0_7, %c0_8, %c32], %2 {strides = array<i32>} : memref<8x16x256xbf16, #tpu.memory_space<vmem>>, vector<8x16x32xbf16>,
    %c0_9 = arith.constant 0 : index
    %c2 = arith.constant 2 : index
    %c0_10 = arith.constant 0 : index
    %4 = vector.load %arg1[%c0_9, %c2, %c0_10] : memref<8x32x32xbf16, #tpu.memory_space<vmem>>, vector<8x16x32xbf16>
    %c0_11 = arith.constant 0 : index
    %c0_12 = arith.constant 0 : index
    %c64 = arith.constant 64 : index
    %5 = vector.load %arg8[%c0_11, %c0_12, %c64] : memref<8x16x256xbf16, #tpu.memory_space<vmem>>, vector<8x16x32xbf16>
    tpu.vector_store %arg8[%c0_11, %c0_12, %c64], %4 {strides = array<i32>} : memref<8x16x256xbf16, #tpu.memory_space<vmem>>, vector<8x16x32xbf16>,
    %c0_13 = arith.constant 0 : index
    %c3 = arith.constant 3 : index
    %c0_14 = arith.constant 0 : index
    %6 = vector.load %arg1[%c0_13, %c3, %c0_14] : memref<8x32x32xbf16, #tpu.memory_space<vmem>>, vector<8x16x32xbf16>
    %c0_15 = arith.constant 0 : index
    %c0_16 = arith.constant 0 : index
    %c96 = arith.constant 96 : index
    %7 = vector.load %arg8[%c0_15, %c0_16, %c96] : memref<8x16x256xbf16, #tpu.memory_space<vmem>>, vector<8x16x32xbf16>
    tpu.vector_store %arg8[%c0_15, %c0_16, %c96], %6 {strides = array<i32>} : memref<8x16x256xbf16, #tpu.memory_space<vmem>>, vector<8x16x32xbf16>,
    %c0_17 = arith.constant 0 : index
    %c4 = arith.constant 4 : index
    %c0_18 = arith.constant 0 : index
    %8 = vector.load %arg1[%c0_17, %c4, %c0_18] : memref<8x32x32xbf16, #tpu.memory_space<vmem>>, vector<8x16x32xbf16>
    %c0_19 = arith.constant 0 : index
    %c0_20 = arith.constant 0 : index
    %c128 = arith.constant 128 : index
    %9 = vector.load %arg8[%c0_19, %c0_20, %c128] : memref<8x16x256xbf16, #tpu.memory_space<vmem>>, vector<8x16x32xbf16>
    tpu.vector_store %arg8[%c0_19, %c0_20, %c128], %8 {strides = array<i32>} : memref<8x16x256xbf16, #tpu.memory_space<vmem>>, vector<8x16x32xbf16>,
    %c0_21 = arith.constant 0 : index
    %c5 = arith.constant 5 : index
    %c0_22 = arith.constant 0 : index
    %10 = vector.load %arg1[%c0_21, %c5, %c0_22] : memref<8x32x32xbf16, #tpu.memory_space<vmem>>, vector<8x16x32xbf16>
    %c0_23 = arith.constant 0 : index
    %c0_24 = arith.constant 0 : index
    %c160 = arith.constant 160 : index
    %11 = vector.load %arg8[%c0_23, %c0_24, %c160] : memref<8x16x256xbf16, #tpu.memory_space<vmem>>, vector<8x16x32xbf16>
    tpu.vector_store %arg8[%c0_23, %c0_24, %c160], %10 {strides = array<i32>} : memref<8x16x256xbf16, #tpu.memory_space<vmem>>, vector<8x16x32xbf16>,
    %c0_25 = arith.constant 0 : index
    %c6 = arith.constant 6 : index
    %c0_26 = arith.constant 0 : index
    %12 = vector.load %arg1[%c0_25, %c6, %c0_26] : memref<8x32x32xbf16, #tpu.memory_space<vmem>>, vector<8x16x32xbf16>
    %c0_27 = arith.constant 0 : index
    %c0_28 = arith.constant 0 : index
    %c192 = arith.constant 192 : index
    %13 = vector.load %arg8[%c0_27, %c0_28, %c192] : memref<8x16x256xbf16, #tpu.memory_space<vmem>>, vector<8x16x32xbf16>
    tpu.vector_store %arg8[%c0_27, %c0_28, %c192], %12 {strides = array<i32>} : memref<8x16x256xbf16, #tpu.memory_space<vmem>>, vector<8x16x32xbf16>,
    %c0_29 = arith.constant 0 : index
    %c7 = arith.constant 7 : index
    %c0_30 = arith.constant 0 : index
    %14 = vector.load %arg1[%c0_29, %c7, %c0_30] : memref<8x32x32xbf16, #tpu.memory_space<vmem>>, vector<8x16x32xbf16>
    %c0_31 = arith.constant 0 : index
    %c0_32 = arith.constant 0 : index
    %c224 = arith.constant 224 : index
    %15 = vector.load %arg8[%c0_31, %c0_32, %c224] : memref<8x16x256xbf16, #tpu.memory_space<vmem>>, vector<8x16x32xbf16>
    tpu.vector_store %arg8[%c0_31, %c0_32, %c224], %14 {strides = array<i32>} : memref<8x16x256xbf16, #tpu.memory_space<vmem>>, vector<8x16x32xbf16>,
    %c0_33 = arith.constant 0 : index
    %c0_34 = arith.constant 0 : index
    %c0_35 = arith.constant 0 : index
    %16 = vector.load %arg8[%c0_33, %c0_34, %c0_35] : memref<8x16x256xbf16, #tpu.memory_space<vmem>>, vector<8x16x256xbf16>
    %17 = vector.shape_cast %16 : vector<8x16x256xbf16> to vector<128x256xbf16>
    %c0_36 = arith.constant 0 : index
    %c0_37 = arith.constant 0 : index
    %18 = vector.load %arg2[%c0_36, %c0_37] : memref<256x128xbf16, #tpu.memory_space<vmem>>, vector<256x128xbf16>
    %cst = arith.constant dense<0.000000e+00> : vector<128x128xf32>
    %19 = tpu.matmul %17, %18, %cst {dimension_numbers = #tpu.dot_dimension_numbers<[1], [0], [0], [1], [0, 0, 1, 1], [], []>} : vector<128x256xbf16>, vector<256x128xbf16>, vector<128x128xf32> -> vector<128x128xf32>
    %20 = vector.shape_cast %19 : vector<128x128xf32> to vector<8x16x128xf32>
    %c0_38 = arith.constant 0 : index
    %c0_39 = arith.constant 0 : index
    %21 = vector.load %arg3[%c0_38, %c0_39] : memref<1x128xf32, #tpu.memory_space<vmem>>, vector<1x128xf32>
    %22 = vector.shape_cast %21 : vector<1x128xf32> to vector<1x1x128xf32>
    %23 = vector.broadcast %22 : vector<1x1x128xf32> to vector<8x16x128xf32>
    %24 = arith.addf %20, %23 : vector<8x16x128xf32>
    %cst_40 = arith.constant 0.000000e+00 : f32
    %25 = vector.broadcast %cst_40 : f32 to vector<8x16x128xf32>
    %26 = arith.maximumf %24, %25 : vector<8x16x128xf32>
    %c0_41 = arith.constant 0 : index
    %c0_42 = arith.constant 0 : index
    %27 = vector.load %arg4[%c0_41, %c0_42] : memref<16x128xf32, #tpu.memory_space<vmem>>, vector<16x128xf32>
    %28 = vector.shape_cast %27 : vector<16x128xf32> to vector<1x16x128xf32>
    %29 = vector.broadcast %28 : vector<1x16x128xf32> to vector<8x16x128xf32>
    %30 = arith.mulf %26, %29 : vector<8x16x128xf32>
    %cst_43 = arith.constant dense<0xFF800000> : vector<8x128xf32>
    %31 = vector.multi_reduction <maximumf>, %30, %cst_43 [1] : vector<8x16x128xf32> to vector<8x128xf32>
    %32 = arith.truncf %31 : vector<8x128xf32> to vector<8x128xbf16>
    %c0_44 = arith.constant 0 : index
    %c0_45 = arith.constant 0 : index
    %33 = vector.load %arg5[%c0_44, %c0_45] : memref<128x128xbf16, #tpu.memory_space<vmem>>, vector<128x128xbf16>
    %cst_46 = arith.constant dense<0.000000e+00> : vector<8x128xf32>
    %34 = tpu.matmul %32, %33, %cst_46 {dimension_numbers = #tpu.dot_dimension_numbers<[1], [0], [0], [1], [0, 0, 1, 1], [], []>} : vector<8x128xbf16>, vector<128x128xbf16>, vector<8x128xf32> -> vector<8x128xf32>
    %c0_47 = arith.constant 0 : index
    %c0_48 = arith.constant 0 : index
    %35 = vector.load %arg6[%c0_47, %c0_48] : memref<1x128xf32, #tpu.memory_space<vmem>>, vector<1x128xf32>
    %36 = vector.broadcast %35 : vector<1x128xf32> to vector<8x128xf32>
    %37 = arith.addf %34, %36 : vector<8x128xf32>
    %c0_49 = arith.constant 0 : index
    %c0_50 = arith.constant 0 : index
    %38 = vector.load %arg7[%c0_49, %c0_50] : memref<8x128xf32, #tpu.memory_space<vmem>>, vector<8x128xf32>
    tpu.vector_store %arg7[%c0_49, %c0_50], %37 {strides = array<i32>} : memref<8x128xf32, #tpu.memory_space<vmem>>, vector<8x128xf32>,
    return
  }
  func.func @transform_0(%arg0: i32) -> (i32, i32, i32) {
    %c0_i32 = arith.constant 0 : i32
    %c0_i32_0 = arith.constant 0 : i32
    %c0_i32_1 = arith.constant 0 : i32
    return %arg0, %c0_i32, %c0_i32_0 : i32, i32, i32
  }
  func.func @transform_1(%arg0: i32) -> (i32, i32) {
    %c0_i32 = arith.constant 0 : i32
    %c0_i32_0 = arith.constant 0 : i32
    %c0_i32_1 = arith.constant 0 : i32
    return %c0_i32, %c0_i32_0 : i32, i32
  }
  func.func @transform_2(%arg0: i32) -> (i32, i32) {
    %c0_i32 = arith.constant 0 : i32
    %c0_i32_0 = arith.constant 0 : i32
    %c0_i32_1 = arith.constant 0 : i32
    return %c0_i32, %c0_i32_0 : i32, i32
  }
  func.func @transform_3(%arg0: i32) -> (i32, i32) {
    %c0_i32 = arith.constant 0 : i32
    %c0_i32_0 = arith.constant 0 : i32
    %c0_i32_1 = arith.constant 0 : i32
    return %c0_i32, %c0_i32_0 : i32, i32
  }
  func.func @transform_4(%arg0: i32) -> (i32, i32) {
    %c0_i32 = arith.constant 0 : i32
    %c0_i32_0 = arith.constant 0 : i32
    %c0_i32_1 = arith.constant 0 : i32
    return %c0_i32, %c0_i32_0 : i32, i32
  }
  func.func @transform_5(%arg0: i32) -> (i32, i32) {
    %c0_i32 = arith.constant 0 : i32
    %c0_i32_0 = arith.constant 0 : i32
    %c0_i32_1 = arith.constant 0 : i32
    return %c0_i32, %c0_i32_0 : i32, i32
  }
  func.func @transform_6(%arg0: i32) -> (i32, i32) {
    %c0_i32 = arith.constant 0 : i32
    %c0_i32_0 = arith.constant 0 : i32
    return %arg0, %c0_i32 : i32, i32
  }
}

</mosaic_0001>

<llo_original>
// kernel: _lambda_.1
$region0: #{_lambda_.1}
  #allocation0 [shape = 'u32[]', space=smem, size = 0x4, offset = 0x4, fixed_abs, tag = 'smem constant byte address 0x4 - core index']
  #allocation1 [shape = 'u32[144,128]{1,0:T(1,128)}', space=vmem, size = 0x12000, scoped, tag = 'internal scratch']
  #allocation2 [shape = 'bf16[8,16,256]{2,1,0:T(8,128)(2,1)}', space=vmem, size = 0x10000, scoped, tag = 'scratch operand']
  %s0 = inlined_call_operand.vmem [shape: bf16[16,32,32], index: 0, kind: input, shape index: {}]
  %s1 = inlined_call_operand.vmem [shape: bf16[256,128], index: 1, kind: input, shape index: {}]
  %s2 = inlined_call_operand.vmem [shape: f32[1,128], index: 2, kind: input, shape index: {}]
  %s3 = inlined_call_operand.vmem [shape: f32[16,128], index: 3, kind: input, shape index: {}]
  %s4 = inlined_call_operand.vmem [shape: bf16[128,128], index: 4, kind: input, shape index: {}]
  %s5 = inlined_call_operand.vmem [shape: f32[1,128], index: 5, kind: input, shape index: {}]
  %s6 = inlined_call_operand.vmem [shape: f32[16,128], index: 6, kind: output, shape index: {}]
  %s7 = sld [smem:[#allocation0]]
  $region57: #{_lambda_.1} parent=0
    _
  %s9 = ssub.s32 1, %s7
  %s10 = scalar_select 0, %s9, %s7
  loop: start=0, step=1, limit=4
  $region2: #{_lambda_.1} parent=0 // loop_pre_header
    _
  $region3: #{_lambda_.1} parent=0 // loop_header
    %s12 = sphi 0, %s16
    %p13 = scmp.ge.s32.totalorder %s12, 4
    %s22 = sphi 0, %s24
    %s25 = sphi 0, %s22
    %s26 = sphi 0, %s25
    %s42 = sphi 0, %s26
    %s46 = sphi 0, %s46
    %s48 = sphi 0, %s46
    %s49 = sphi 0, %s48
    %s63 = sphi 0, %s49
    %s67 = sphi 0, %s67
    %s69 = sphi 0, %s67
    %s70 = sphi 0, %s69
    %s84 = sphi 0, %s70
    %s88 = sphi 0, %s88
    %s90 = sphi 0, %s88
    %s91 = sphi 0, %s90
    %s105 = sphi 0, %s91
    %s109 = sphi 0, %s109
    %s111 = sphi 0, %s109
    %s112 = sphi 0, %s111
    %s126 = sphi 0, %s112
    %s130 = sphi 0, %s130
    %s132 = sphi 0, %s130
    %s133 = sphi 0, %s132
    %s147 = sphi 0, %s133
    %s153 = sphi 0, %s155
    %s156 = sphi 0, %s153
    %s157 = sphi 0, %s156
    %s173 = sphi 0, %s157
  $region4: #{_lambda_.1} parent=0 // loop_header_branch
    %15 = sbr.rel (%p13) target = $region8
  $region5: #{_lambda_.1} parent=0 // loop_body
    %s17 = ssub.s32 %s12, 1
    %s18 = ssub.s32 %s12, 2
    %s19 = sadd.s32 %s12, 1
    %s20 = ssub.s32 %s12, %s19
    %p21 = scmp.eq.s32.totalorder %s20, 0
    %s23 = sadd.s32 %s22, 1
    %s24 = scalar_select %p21, %s22, %s23
    %p27 = pneg %p21
    %p28 = scmp.eq.s32.totalorder %s12, 1
    %p29 = por %p27, %p28
    %p30 = scmp.ne.s32.totalorder %s22, %s25
    %p31 = scmp.eq.s32.totalorder %s12, 0
    %p32 = por %p30, %p31
    %p33 = scmp.ne.s32.totalorder %s22, %s25
    %p34 = scmp.eq.s32.totalorder %s17, 1
    %p35 = por %p33, %p34
    %p36 = scmp.ne.s32.totalorder %s25, %s26
    %p37 = scmp.eq.s32.totalorder %s17, 0
    %p38 = por %p36, %p37
    %p39 = scmp.ne.s32.totalorder %s25, %s26
    %p40 = scmp.eq.s32.totalorder %s18, 1
    %p41 = por %p39, %p40
    %p43 = scmp.ne.s32.totalorder %s26, %s42
    %p44 = scmp.eq.s32.totalorder %s18, 0
    %p45 = por %p43, %p44
    %s47 = sadd.s32 %s46, 1
    %p50 = scmp.eq.s32.totalorder %s12, 1
    %p51 = scmp.ne.s32.totalorder %s46, %s48
    %p52 = scmp.eq.s32.totalorder %s12, 0
    %p53 = por %p51, %p52
    %p54 = scmp.ne.s32.totalorder %s46, %s48
    %p55 = scmp.eq.s32.totalorder %s17, 1
    %p56 = por %p54, %p55
    %p57 = scmp.ne.s32.totalorder %s48, %s49
    %p58 = scmp.eq.s32.totalorder %s17, 0
    %p59 = por %p57, %p58
    %p60 = scmp.ne.s32.totalorder %s48, %s49
    %p61 = scmp.eq.s32.totalorder %s18, 1
    %p62 = por %p60, %p61
    %p64 = scmp.ne.s32.totalorder %s49, %s63
    %p65 = scmp.eq.s32.totalorder %s18, 0
    %p66 = por %p64, %p65
    %s68 = sadd.s32 %s67, 1
    %p71 = scmp.eq.s32.totalorder %s12, 1
    %p72 = scmp.ne.s32.totalorder %s67, %s69
    %p73 = scmp.eq.s32.totalorder %s12, 0
    %p74 = por %p72, %p73
    %p75 = scmp.ne.s32.totalorder %s67, %s69
    %p76 = scmp.eq.s32.totalorder %s17, 1
    %p77 = por %p75, %p76
    %p78 = scmp.ne.s32.totalorder %s69, %s70
    %p79 = scmp.eq.s32.totalorder %s17, 0
    %p80 = por %p78, %p79
    %p81 = scmp.ne.s32.totalorder %s69, %s70
    %p82 = scmp.eq.s32.totalorder %s18, 1
    %p83 = por %p81, %p82
    %p85 = scmp.ne.s32.totalorder %s70, %s84
    %p86 = scmp.eq.s32.totalorder %s18, 0
    %p87 = por %p85, %p86
    %s89 = sadd.s32 %s88, 1
    %p92 = scmp.eq.s32.totalorder %s12, 1
    %p93 = scmp.ne.s32.totalorder %s88, %s90
    %p94 = scmp.eq.s32.totalorder %s12, 0
    %p95 = por %p93, %p94
    %p96 = scmp.ne.s32.totalorder %s88, %s90
    %p97 = scmp.eq.s32.totalorder %s17, 1
    %p98 = por %p96, %p97
    %p99 = scmp.ne.s32.totalorder %s90, %s91
    %p100 = scmp.eq.s32.totalorder %s17, 0
    %p101 = por %p99, %p100
    %p102 = scmp.ne.s32.totalorder %s90, %s91
    %p103 = scmp.eq.s32.totalorder %s18, 1
    %p104 = por %p102, %p103
    %p106 = scmp.ne.s32.totalorder %s91, %s105
    %p107 = scmp.eq.s32.totalorder %s18, 0
    %p108 = por %p106, %p107
    %s110 = sadd.s32 %s109, 1
    %p113 = scmp.eq.s32.totalorder %s12, 1
    %p114 = scmp.ne.s32.totalorder %s109, %s111
    %p115 = scmp.eq.s32.totalorder %s12, 0
    %p116 = por %p114, %p115
    %p117 = scmp.ne.s32.totalorder %s109, %s111
    %p118 = scmp.eq.s32.totalorder %s17, 1
    %p119 = por %p117, %p118
    %p120 = scmp.ne.s32.totalorder %s111, %s112
    %p121 = scmp.eq.s32.totalorder %s17, 0
    %p122 = por %p120, %p121
    %p123 = scmp.ne.s32.totalorder %s111, %s112
    %p124 = scmp.eq.s32.totalorder %s18, 1
    %p125 = por %p123, %p124
    %p127 = scmp.ne.s32.totalorder %s112, %s126
    %p128 = scmp.eq.s32.totalorder %s18, 0
    %p129 = por %p127, %p128
    %s131 = sadd.s32 %s130, 1
    %p134 = scmp.eq.s32.totalorder %s12, 1
    %p135 = scmp.ne.s32.totalorder %s130, %s132
    %p136 = scmp.eq.s32.totalorder %s12, 0
    %p137 = por %p135, %p136
    %p138 = scmp.ne.s32.totalorder %s130, %s132
    %p139 = scmp.eq.s32.totalorder %s17, 1
    %p140 = por %p138, %p139
    %p141 = scmp.ne.s32.totalorder %s132, %s133
    %p142 = scmp.eq.s32.totalorder %s17, 0
    %p143 = por %p141, %p142
    %p144 = scmp.ne.s32.totalorder %s132, %s133
    %p145 = scmp.eq.s32.totalorder %s18, 1
    %p146 = por %p144, %p145
    %p148 = scmp.ne.s32.totalorder %s133, %s147
    %p149 = scmp.eq.s32.totalorder %s18, 0
    %p150 = por %p148, %p149
    %s151 = ssub.s32 %s12, %s19
    %p152 = scmp.eq.s32.totalorder %s151, 0
    %s154 = sadd.s32 %s153, 1
    %s155 = scalar_select %p152, %s153, %s154
    %p158 = pneg %p152
    %p159 = scmp.eq.s32.totalorder %s12, 1
    %p160 = por %p158, %p159
    %p161 = scmp.ne.s32.totalorder %s153, %s156
    %p162 = scmp.eq.s32.totalorder %s12, 0
    %p163 = por %p161, %p162
    %p164 = scmp.ne.s32.totalorder %s153, %s156
    %p165 = scmp.eq.s32.totalorder %s17, 1
    %p166 = por %p164, %p165
    %p167 = scmp.ne.s32.totalorder %s156, %s157
    %p168 = scmp.eq.s32.totalorder %s17, 0
    %p169 = por %p167, %p168
    %p170 = scmp.ne.s32.totalorder %s156, %s157
    %p171 = scmp.eq.s32.totalorder %s18, 1
    %p172 = por %p170, %p171
    %p174 = scmp.ne.s32.totalorder %s157, %s173
    %p175 = scmp.eq.s32.totalorder %s18, 0
    %p176 = por %p174, %p175
    %p177 = scmp.le.s32.totalorder 1, %s12
    %p178 = scmp.lt.s32.totalorder %s12, 3
    %p179 = pnand %p177, %p178
    %p180 = pneg %p179
    // Predicated region
    $region9: #{_lambda_.1} parent=5 // pred_check
      _
    $region10: #{_lambda_.1} parent=5 // pred_check_branch
      %182 = sbr.rel (%p179) target = $region12
    $region11: #{_lambda_.1} parent=5 // pred_region
      %s183 = ssub.s32 %s12, 1
      // Predicated region
      $region13: #{_lambda_.1} parent=11 // pred_check
        %p184 = pneg %p59
      $region14: #{_lambda_.1} parent=11 // pred_check_branch
        %186 = sbr.rel (%p184) target = $region16
      $region15: #{_lambda_.1} parent=11 // pred_region
        _
      $region16: #{_lambda_.1} parent=11 // pred_fallthru
        _
      // Predicated region
      $region17: #{_lambda_.1} parent=11 // pred_check
        %p187 = pneg %p80
      $region18: #{_lambda_.1} parent=11 // pred_check_branch
        %189 = sbr.rel (%p187) target = $region20
      $region19: #{_lambda_.1} parent=11 // pred_region
        _
      $region20: #{_lambda_.1} parent=11 // pred_fallthru
        _
      // Predicated region
      $region21: #{_lambda_.1} parent=11 // pred_check
        %p190 = pneg %p101
      $region22: #{_lambda_.1} parent=11 // pred_check_branch
        %192 = sbr.rel (%p190) target = $region24
      $region23: #{_lambda_.1} parent=11 // pred_region
        _
      $region24: #{_lambda_.1} parent=11 // pred_fallthru
        _
      // Predicated region
      $region25: #{_lambda_.1} parent=11 // pred_check
        %p193 = pneg %p122
      $region26: #{_lambda_.1} parent=11 // pred_check_branch
        %195 = sbr.rel (%p193) target = $region28
      $region27: #{_lambda_.1} parent=11 // pred_region
        _
      $region28: #{_lambda_.1} parent=11 // pred_fallthru
        _
      // Predicated region
      $region29: #{_lambda_.1} parent=11 // pred_check
        %p196 = pneg %p143
      $region30: #{_lambda_.1} parent=11 // pred_check_branch
        %198 = sbr.rel (%p196) target = $region32
      $region31: #{_lambda_.1} parent=11 // pred_region
        _
      $region32: #{_lambda_.1} parent=11 // pred_fallthru
        _
    $region12: #{_lambda_.1} parent=5 // pred_fallthru
      _
    %p199 = scmp.lt.s32.totalorder %s12, 2
    // Predicated region
    $region33: #{_lambda_.1} parent=5 // pred_check
      %p200 = pneg %p199
    $region34: #{_lambda_.1} parent=5 // pred_check_branch
      %202 = sbr.rel (%p200) target = $region36
    $region35: #{_lambda_.1} parent=5 // pred_region
      // Predicated region
      $region37: #{_lambda_.1} parent=35 // pred_check
        %p203 = pneg %p32
      $region38: #{_lambda_.1} parent=35 // pred_check_branch
        %205 = sbr.rel (%p203) target = $region40
      $region39: #{_lambda_.1} parent=35 // pred_region
        %s206 = smul.u32 8, %s12
        %p207 = scmp.lt.s32.totalorder %s206, 15
        %s208 = scalar_select %p207, %s206, 15
        %s209 = smul.addr %s208, 4
        %s210 = smul.addr %s209, 4
        %s211 = scalar_lea.vmem %s0, %s210
        %s212 = smul.u32 8, %s12
      $region40: #{_lambda_.1} parent=35 // pred_fallthru
        _
    $region36: #{_lambda_.1} parent=5 // pred_fallthru
      _
    %p213 = scmp.le.s32.totalorder 1, %s12
    %p214 = scmp.lt.s32.totalorder %s12, 3
    %p215 = pnand %p213, %p214
    %p216 = pneg %p215
    // Predicated region
    $region41: #{_lambda_.1} parent=5 // pred_check
      _
    $region42: #{_lambda_.1} parent=5 // pred_check_branch
      %218 = sbr.rel (%p215) target = $region44
    $region43: #{_lambda_.1} parent=5 // pred_region
      %s219 = ssub.s32 %s12, 1
      %s220 = smul.u32 8, %s17
      %p221 = scmp.lt.s32.totalorder %s220, 15
      %s222 = scalar_select %p221, %s220, 15
      %s223 = smul.addr %s222, 4
      %s224 = smul.addr %s223, 4
      %s225 = scalar_lea.vmem %s0, %s224
      %p226 = pneg %p38
      %p227 = pneg %p35
      %p228 = pneg %p59
      %p229 = pneg %p56
      %p230 = pneg %p80
      %p231 = pneg %p77
      %p232 = pneg %p101
      %p233 = pneg %p98
      %p234 = pneg %p122
      %p235 = pneg %p119
      %p236 = pneg %p143
      %p237 = pneg %p140
      %p238 = pneg %p169
      %p239 = pneg %p166
      %p240 = scmp.lt.s32.totalorder %s17, 1
      %s241 = scalar_select %p240, %s17, 1
      %s242 = smul.addr %s241, 8
      %s243 = scalar_lea.vmem %s6, %s242
      %s244 = smul.u32 8, %s17
      %p245 = scmp.lt.s32.totalorder %s244, 15
      %s246 = scalar_select %p245, %s244, 15
      %s247 = smul.addr %s246, 4
      %s248 = smul.addr %s247, 4
      %s249 = scalar_lea.vmem %s0, %s248
      %s250 = smul.u32 8, %s17
      %p251 = scmp.lt.s32.totalorder %s17, 1
      %s252 = scalar_select %p251, %s17, 1
      %s253 = smul.addr %s252, 8
      %s254 = scalar_lea.vmem %s6, %s253
      %v256 = vld [vmem:[%s249] sm:$0xf]
      %v257 = vld [vmem:[%s249 + $0x4] sm:$0xf]
      %v258 = vld [vmem:[%s249 + $0x10] sm:$0xf]
      %v259 = vld [vmem:[%s249 + $0x14] sm:$0xf]
      %v260 = vld [vmem:[%s249 + $0x20] sm:$0xf]
      %v261 = vld [vmem:[%s249 + $0x24] sm:$0xf]
      %v262 = vld [vmem:[%s249 + $0x30] sm:$0xf]
      %v263 = vld [vmem:[%s249 + $0x34] sm:$0xf]
      %v264 = vld [vmem:[%s249 + $0x40] sm:$0xf]
      %v265 = vld [vmem:[%s249 + $0x44] sm:$0xf]
      %v266 = vld [vmem:[%s249 + $0x50] sm:$0xf]
      %v267 = vld [vmem:[%s249 + $0x54] sm:$0xf]
      %v268 = vld [vmem:[%s249 + $0x60] sm:$0xf]
      %v269 = vld [vmem:[%s249 + $0x64] sm:$0xf]
      %v270 = vld [vmem:[%s249 + $0x70] sm:$0xf]
      %v271 = vld [vmem:[%s249 + $0x74] sm:$0xf]
      %vm272 = vcmask 257024
      %273 = vst.msk [vmem:[#allocation2] sm:$0xf] %vm272, %v256
      %274 = vst.msk [vmem:[#allocation2 + $0x8] sm:$0xf] %vm272, %v257
      %275 = vst.msk [vmem:[#allocation2 + $0x10] sm:$0xf] %vm272, %v258
      %276 = vst.msk [vmem:[#allocation2 + $0x18] sm:$0xf] %vm272, %v259
      %277 = vst.msk [vmem:[#allocation2 + $0x20] sm:$0xf] %vm272, %v260
      %278 = vst.msk [vmem:[#allocation2 + $0x28] sm:$0xf] %vm272, %v261
      %279 = vst.msk [vmem:[#allocation2 + $0x30] sm:$0xf] %vm272, %v262
      %280 = vst.msk [vmem:[#allocation2 + $0x38] sm:$0xf] %vm272, %v263
      %281 = vst.msk [vmem:[#allocation2 + $0x40] sm:$0xf] %vm272, %v264
      %282 = vst.msk [vmem:[#allocation2 + $0x48] sm:$0xf] %vm272, %v265
      %283 = vst.msk [vmem:[#allocation2 + $0x50] sm:$0xf] %vm272, %v266
      %284 = vst.msk [vmem:[#allocation2 + $0x58] sm:$0xf] %vm272, %v267
      %285 = vst.msk [vmem:[#allocation2 + $0x60] sm:$0xf] %vm272, %v268
      %286 = vst.msk [vmem:[#allocation2 + $0x68] sm:$0xf] %vm272, %v269
      %287 = vst.msk [vmem:[#allocation2 + $0x70] sm:$0xf] %vm272, %v270
      %288 = vst.msk [vmem:[#allocation2 + $0x78] sm:$0xf] %vm272, %v271
      %v289 = vld [vmem:[%s249] sm:$0xf]
      %v290 = vld [vmem:[%s249 + $0x4] sm:$0xf]
      %v291 = vld [vmem:[%s249 + $0x8] sm:$0x1]
      %v292 = vld [vmem:[%s249 + $0x10] sm:$0xf]
      %v293 = vld [vmem:[%s249 + $0x14] sm:$0xf]
      %v294 = vld [vmem:[%s249 + $0x18] sm:$0x1]
      %v295 = vld [vmem:[%s249 + $0x20] sm:$0xf]
      %v296 = vld [vmem:[%s249 + $0x24] sm:$0xf]
      %v297 = vld [vmem:[%s249 + $0x28] sm:$0x1]
      %v298 = vld [vmem:[%s249 + $0x30] sm:$0xf]
      %v299 = vld [vmem:[%s249 + $0x34] sm:$0xf]
      %v300 = vld [vmem:[%s249 + $0x38] sm:$0x1]
      %v301 = vld [vmem:[%s249 + $0x40] sm:$0xf]
      %v302 = vld [vmem:[%s249 + $0x44] sm:$0xf]
      %v303 = vld [vmem:[%s249 + $0x48] sm:$0x1]
      %v304 = vld [vmem:[%s249 + $0x50] sm:$0xf]
      %v305 = vld [vmem:[%s249 + $0x54] sm:$0xf]
      %v306 = vld [vmem:[%s249 + $0x58] sm:$0x1]
      %v307 = vld [vmem:[%s249 + $0x60] sm:$0xf]
      %v308 = vld [vmem:[%s249 + $0x64] sm:$0xf]
      %v309 = vld [vmem:[%s249 + $0x68] sm:$0x1]
      %v310 = vld [vmem:[%s249 + $0x70] sm:$0xf]
      %v311 = vld [vmem:[%s249 + $0x74] sm:$0xf]
      %v312 = vld [vmem:[%s249 + $0x78] sm:$0x1]
      %vm313 = vsmask.f32 3328
      %vm314 = vsmask.f32 7440
      %vm315 = vmor %vm313, %vm314
      %v317 = vshrl.u32 %v289, 16
      %v319 = vrot.slane %v317, 4
      %v320 = vshll.u32 %v289, 16
      %v322 = vrot.slane %v320, 5
      %v323 = vor.u32 %v319, %v322
      %v324 = vrot.slane %v323, 4
      %v326 = vshll.u32 %v290, 16
      %v328 = vrot.slane %v326, 5
      %v329 = vsel %vm315, %v324, %v328
      %v330 = vshrl.u32 %v290, 16
      %v332 = vrot.slane %v330, 4
      %v333 = vor.u32 %v332, %v328
      %v334 = vrot.slane %v333, 4
      %v336 = vshll.u32 %v291, 16
      %v338 = vrot.slane %v336, 5
      %v339 = vsel %vm315, %v334, %v338
      %v341 = vshrl.u32 %v292, 16
      %v343 = vrot.slane %v341, 4
      %v344 = vshll.u32 %v292, 16
      %v346 = vrot.slane %v344, 5
      %v347 = vor.u32 %v343, %v346
      %v348 = vrot.slane %v347, 4
      %v350 = vshll.u32 %v293, 16
      %v352 = vrot.slane %v350, 5
      %v353 = vsel %vm315, %v348, %v352
      %v354 = vshrl.u32 %v293, 16
      %v356 = vrot.slane %v354, 4
      %v357 = vor.u32 %v356, %v352
      %v358 = vrot.slane %v357, 4
      %v360 = vshll.u32 %v294, 16
      %v362 = vrot.slane %v360, 5
      %v363 = vsel %vm315, %v358, %v362
      %v365 = vshrl.u32 %v295, 16
      %v367 = vrot.slane %v365, 4
      %v368 = vshll.u32 %v295, 16
      %v370 = vrot.slane %v368, 5
      %v371 = vor.u32 %v367, %v370
      %v372 = vrot.slane %v371, 4
      %v374 = vshll.u32 %v296, 16
      %v376 = vrot.slane %v374, 5
      %v377 = vsel %vm315, %v372, %v376
      %v378 = vshrl.u32 %v296, 16
      %v380 = vrot.slane %v378, 4
      %v381 = vor.u32 %v380, %v376
      %v382 = vrot.slane %v381, 4
      %v384 = vshll.u32 %v297, 16
      %v386 = vrot.slane %v384, 5
      %v387 = vsel %vm315, %v382, %v386
      %v389 = vshrl.u32 %v298, 16
      %v391 = vrot.slane %v389, 4
      %v392 = vshll.u32 %v298, 16
      %v394 = vrot.slane %v392, 5
      %v395 = vor.u32 %v391, %v394
      %v396 = vrot.slane %v395, 4
      %v398 = vshll.u32 %v299, 16
      %v400 = vrot.slane %v398, 5
      %v401 = vsel %vm315, %v396, %v400
      %v402 = vshrl.u32 %v299, 16
      %v404 = vrot.slane %v402, 4
      %v405 = vor.u32 %v404, %v400
      %v406 = vrot.slane %v405, 4
      %v408 = vshll.u32 %v300, 16
      %v410 = vrot.slane %v408, 5
      %v411 = vsel %vm315, %v406, %v410
      %v413 = vshrl.u32 %v301, 16
      %v415 = vrot.slane %v413, 4
      %v416 = vshll.u32 %v301, 16
      %v418 = vrot.slane %v416, 5
      %v419 = vor.u32 %v415, %v418
      %v420 = vrot.slane %v419, 4
      %v422 = vshll.u32 %v302, 16
      %v424 = vrot.slane %v422, 5
      %v425 = vsel %vm315, %v420, %v424
      %v426 = vshrl.u32 %v302, 16
      %v428 = vrot.slane %v426, 4
      %v429 = vor.u32 %v428, %v424
      %v430 = vrot.slane %v429, 4
      %v432 = vshll.u32 %v303, 16
      %v434 = vrot.slane %v432, 5
      %v435 = vsel %vm315, %v430, %v434
      %v437 = vshrl.u32 %v304, 16
      %v439 = vrot.slane %v437, 4
      %v440 = vshll.u32 %v304, 16
      %v442 = vrot.slane %v440, 5
      %v443 = vor.u32 %v439, %v442
      %v444 = vrot.slane %v443, 4
      %v446 = vshll.u32 %v305, 16
      %v448 = vrot.slane %v446, 5
      %v449 = vsel %vm315, %v444, %v448
      %v450 = vshrl.u32 %v305, 16
      %v452 = vrot.slane %v450, 4
      %v453 = vor.u32 %v452, %v448
      %v454 = vrot.slane %v453, 4
      %v456 = vshll.u32 %v306, 16
      %v458 = vrot.slane %v456, 5
      %v459 = vsel %vm315, %v454, %v458
      %v461 = vshrl.u32 %v307, 16
      %v463 = vrot.slane %v461, 4
      %v464 = vshll.u32 %v307, 16
      %v466 = vrot.slane %v464, 5
      %v467 = vor.u32 %v463, %v466
      %v468 = vrot.slane %v467, 4
      %v470 = vshll.u32 %v308, 16
      %v472 = vrot.slane %v470, 5
      %v473 = vsel %vm315, %v468, %v472
      %v474 = vshrl.u32 %v308, 16
      %v476 = vrot.slane %v474, 4
      %v477 = vor.u32 %v476, %v472
      %v478 = vrot.slane %v477, 4
      %v480 = vshll.u32 %v309, 16
      %v482 = vrot.slane %v480, 5
      %v483 = vsel %vm315, %v478, %v482
      %v485 = vshrl.u32 %v310, 16
      %v487 = vrot.slane %v485, 4
      %v488 = vshll.u32 %v310, 16
      %v490 = vrot.slane %v488, 5
      %v491 = vor.u32 %v487, %v490
      %v492 = vrot.slane %v491, 4
      %v494 = vshll.u32 %v311, 16
      %v496 = vrot.slane %v494, 5
      %v497 = vsel %vm315, %v492, %v496
      %v498 = vshrl.u32 %v311, 16
      %v500 = vrot.slane %v498, 4
      %v501 = vor.u32 %v500, %v496
      %v502 = vrot.slane %v501, 4
      %v504 = vshll.u32 %v312, 16
      %v506 = vrot.slane %v504, 5
      %v507 = vsel %vm315, %v502, %v506
      %508 = vrot.lane.b32.xlu0 %v329, 32
      %v509 = vpop.permute.xlu0 %508
      %510 = vrot.lane.b32.xlu0 %v339, 32
      %v511 = vpop.permute.xlu0 %510
      %512 = vrot.lane.b32.xlu0 %v353, 32
      %v513 = vpop.permute.xlu0 %512
      %514 = vrot.lane.b32.xlu0 %v363, 32
      %v515 = vpop.permute.xlu0 %514
      %516 = vrot.lane.b32.xlu0 %v377, 32
      %v517 = vpop.permute.xlu0 %516
      %518 = vrot.lane.b32.xlu0 %v387, 32
      %v519 = vpop.permute.xlu0 %518
      %520 = vrot.lane.b32.xlu0 %v401, 32
      %v521 = vpop.permute.xlu0 %520
      %522 = vrot.lane.b32.xlu0 %v411, 32
      %v523 = vpop.permute.xlu0 %522
      %524 = vrot.lane.b32.xlu0 %v425, 32
      %v525 = vpop.permute.xlu0 %524
      %526 = vrot.lane.b32.xlu0 %v435, 32
      %v527 = vpop.permute.xlu0 %526
      %528 = vrot.lane.b32.xlu0 %v449, 32
      %v529 = vpop.permute.xlu0 %528
      %530 = vrot.lane.b32.xlu0 %v459, 32
      %v531 = vpop.permute.xlu0 %530
      %532 = vrot.lane.b32.xlu0 %v473, 32
      %v533 = vpop.permute.xlu0 %532
      %534 = vrot.lane.b32.xlu0 %v483, 32
      %v535 = vpop.permute.xlu0 %534
      %536 = vrot.lane.b32.xlu0 %v497, 32
      %v537 = vpop.permute.xlu0 %536
      %538 = vrot.lane.b32.xlu0 %v507, 32
      %v539 = vpop.permute.xlu0 %538
      %vm556 = vcmask 519424
      %557 = vst.msk [vmem:[#allocation2] sm:$0xf] %vm556, %v509
      %558 = vst.msk [vmem:[#allocation2 + $0x8] sm:$0xf] %vm556, %v511
      %559 = vst.msk [vmem:[#allocation2 + $0x10] sm:$0xf] %vm556, %v513
      %560 = vst.msk [vmem:[#allocation2 + $0x18] sm:$0xf] %vm556, %v515
      %561 = vst.msk [vmem:[#allocation2 + $0x20] sm:$0xf] %vm556, %v517
      %562 = vst.msk [vmem:[#allocation2 + $0x28] sm:$0xf] %vm556, %v519
      %563 = vst.msk [vmem:[#allocation2 + $0x30] sm:$0xf] %vm556, %v521
      %564 = vst.msk [vmem:[#allocation2 + $0x38] sm:$0xf] %vm556, %v523
      %565 = vst.msk [vmem:[#allocation2 + $0x40] sm:$0xf] %vm556, %v525
      %566 = vst.msk [vmem:[#allocation2 + $0x48] sm:$0xf] %vm556, %v527
      %567 = vst.msk [vmem:[#allocation2 + $0x50] sm:$0xf] %vm556, %v529
      %568 = vst.msk [vmem:[#allocation2 + $0x58] sm:$0xf] %vm556, %v531
      %569 = vst.msk [vmem:[#allocation2 + $0x60] sm:$0xf] %vm556, %v533
      %570 = vst.msk [vmem:[#allocation2 + $0x68] sm:$0xf] %vm556, %v535
      %571 = vst.msk [vmem:[#allocation2 + $0x70] sm:$0xf] %vm556, %v537
      %572 = vst.msk [vmem:[#allocation2 + $0x78] sm:$0xf] %vm556, %v539
      %v573 = vld [vmem:[%s249] sm:$0xe]
      %v574 = vld [vmem:[%s249 + $0x4] sm:$0xf]
      %v575 = vld [vmem:[%s249 + $0x8] sm:$0x1]
      %v576 = vld [vmem:[%s249 + $0x10] sm:$0xe]
      %v577 = vld [vmem:[%s249 + $0x14] sm:$0xf]
      %v578 = vld [vmem:[%s249 + $0x18] sm:$0x1]
      %v579 = vld [vmem:[%s249 + $0x20] sm:$0xe]
      %v580 = vld [vmem:[%s249 + $0x24] sm:$0xf]
      %v581 = vld [vmem:[%s249 + $0x28] sm:$0x1]
      %v582 = vld [vmem:[%s249 + $0x30] sm:$0xe]
      %v583 = vld [vmem:[%s249 + $0x34] sm:$0xf]
      %v584 = vld [vmem:[%s249 + $0x38] sm:$0x1]
      %v585 = vld [vmem:[%s249 + $0x40] sm:$0xe]
      %v586 = vld [vmem:[%s249 + $0x44] sm:$0xf]
      %v587 = vld [vmem:[%s249 + $0x48] sm:$0x1]
      %v588 = vld [vmem:[%s249 + $0x50] sm:$0xe]
      %v589 = vld [vmem:[%s249 + $0x54] sm:$0xf]
      %v590 = vld [vmem:[%s249 + $0x58] sm:$0x1]
      %v591 = vld [vmem:[%s249 + $0x60] sm:$0xe]
      %v592 = vld [vmem:[%s249 + $0x64] sm:$0xf]
      %v593 = vld [vmem:[%s249 + $0x68] sm:$0x1]
      %v594 = vld [vmem:[%s249 + $0x70] sm:$0xe]
      %v595 = vld [vmem:[%s249 + $0x74] sm:$0xf]
      %v596 = vld [vmem:[%s249 + $0x78] sm:$0x1]
      %vm621 = vcmask 1042432
      %vm622 = vcmask 1046532
      %vm623 = vmor %vm621, %vm622
      %v624 = vrot.slane %v573, 5
      %v625 = vrot.slane %v624, 4
      %v626 = vrot.slane %v574, 5
      %v627 = vsel %vm623, %v625, %v626
      %v628 = vrot.slane %v626, 4
      %v629 = vrot.slane %v575, 5
      %v630 = vsel %vm623, %v628, %v629
      %v631 = vrot.slane %v576, 5
      %v632 = vrot.slane %v631, 4
      %v633 = vrot.slane %v577, 5
      %v634 = vsel %vm623, %v632, %v633
      %v635 = vrot.slane %v633, 4
      %v636 = vrot.slane %v578, 5
      %v637 = vsel %vm623, %v635, %v636
      %v638 = vrot.slane %v579, 5
      %v639 = vrot.slane %v638, 4
      %v640 = vrot.slane %v580, 5
      %v641 = vsel %vm623, %v639, %v640
      %v642 = vrot.slane %v640, 4
      %v643 = vrot.slane %v581, 5
      %v644 = vsel %vm623, %v642, %v643
      %v645 = vrot.slane %v582, 5
      %v646 = vrot.slane %v645, 4
      %v647 = vrot.slane %v583, 5
      %v648 = vsel %vm623, %v646, %v647
      %v649 = vrot.slane %v647, 4
      %v650 = vrot.slane %v584, 5
      %v651 = vsel %vm623, %v649, %v650
      %v652 = vrot.slane %v585, 5
      %v653 = vrot.slane %v652, 4
      %v654 = vrot.slane %v586, 5
      %v655 = vsel %vm623, %v653, %v654
      %v656 = vrot.slane %v654, 4
      %v657 = vrot.slane %v587, 5
      %v658 = vsel %vm623, %v656, %v657
      %v659 = vrot.slane %v588, 5
      %v660 = vrot.slane %v659, 4
      %v661 = vrot.slane %v589, 5
      %v662 = vsel %vm623, %v660, %v661
      %v663 = vrot.slane %v661, 4
      %v664 = vrot.slane %v590, 5
      %v665 = vsel %vm623, %v663, %v664
      %v666 = vrot.slane %v591, 5
      %v667 = vrot.slane %v666, 4
      %v668 = vrot.slane %v592, 5
      %v669 = vsel %vm623, %v667, %v668
      %v670 = vrot.slane %v668, 4
      %v671 = vrot.slane %v593, 5
      %v672 = vsel %vm623, %v670, %v671
      %v673 = vrot.slane %v594, 5
      %v674 = vrot.slane %v673, 4
      %v675 = vrot.slane %v595, 5
      %v676 = vsel %vm623, %v674, %v675
      %v677 = vrot.slane %v675, 4
      %v678 = vrot.slane %v596, 5
      %v679 = vsel %vm623, %v677, %v678
      %680 = vrot.lane.b32.xlu0 %v627, 64
      %v681 = vpop.permute.xlu0 %680
      %682 = vrot.lane.b32.xlu0 %v630, 64
      %v683 = vpop.permute.xlu0 %682
      %684 = vrot.lane.b32.xlu0 %v634, 64
      %v685 = vpop.permute.xlu0 %684
      %686 = vrot.lane.b32.xlu0 %v637, 64
      %v687 = vpop.permute.xlu0 %686
      %688 = vrot.lane.b32.xlu0 %v641, 64
      %v689 = vpop.permute.xlu0 %688
      %690 = vrot.lane.b32.xlu0 %v644, 64
      %v691 = vpop.permute.xlu0 %690
      %692 = vrot.lane.b32.xlu0 %v648, 64
      %v693 = vpop.permute.xlu0 %692
      %694 = vrot.lane.b32.xlu0 %v651, 64
      %v695 = vpop.permute.xlu0 %694
      %696 = vrot.lane.b32.xlu0 %v655, 64
      %v697 = vpop.permute.xlu0 %696
      %698 = vrot.lane.b32.xlu0 %v658, 64
      %v699 = vpop.permute.xlu0 %698
      %700 = vrot.lane.b32.xlu0 %v662, 64
      %v701 = vpop.permute.xlu0 %700
      %702 = vrot.lane.b32.xlu0 %v665, 64
      %v703 = vpop.permute.xlu0 %702
      %704 = vrot.lane.b32.xlu0 %v669, 64
      %v705 = vpop.permute.xlu0 %704
      %706 = vrot.lane.b32.xlu0 %v672, 64
      %v707 = vpop.permute.xlu0 %706
      %708 = vrot.lane.b32.xlu0 %v676, 64
      %v709 = vpop.permute.xlu0 %708
      %710 = vrot.lane.b32.xlu0 %v679, 64
      %v711 = vpop.permute.xlu0 %710
      %vm728 = vcmask 781824
      %729 = vst.msk [vmem:[#allocation2] sm:$0xf] %vm728, %v681
      %730 = vst.msk [vmem:[#allocation2 + $0x8] sm:$0xf] %vm728, %v683
      %731 = vst.msk [vmem:[#allocation2 + $0x10] sm:$0xf] %vm728, %v685
      %732 = vst.msk [vmem:[#allocation2 + $0x18] sm:$0xf] %vm728, %v687
      %733 = vst.msk [vmem:[#allocation2 + $0x20] sm:$0xf] %vm728, %v689
      %734 = vst.msk [vmem:[#allocation2 + $0x28] sm:$0xf] %vm728, %v691
      %735 = vst.msk [vmem:[#allocation2 + $0x30] sm:$0xf] %vm728, %v693
      %736 = vst.msk [vmem:[#allocation2 + $0x38] sm:$0xf] %vm728, %v695
      %737 = vst.msk [vmem:[#allocation2 + $0x40] sm:$0xf] %vm728, %v697
      %738 = vst.msk [vmem:[#allocation2 + $0x48] sm:$0xf] %vm728, %v699
      %739 = vst.msk [vmem:[#allocation2 + $0x50] sm:$0xf] %vm728, %v701
      %740 = vst.msk [vmem:[#allocation2 + $0x58] sm:$0xf] %vm728, %v703
      %741 = vst.msk [vmem:[#allocation2 + $0x60] sm:$0xf] %vm728, %v705
      %742 = vst.msk [vmem:[#allocation2 + $0x68] sm:$0xf] %vm728, %v707
      %743 = vst.msk [vmem:[#allocation2 + $0x70] sm:$0xf] %vm728, %v709
      %744 = vst.msk [vmem:[#allocation2 + $0x78] sm:$0xf] %vm728, %v711
      %v745 = vld [vmem:[%s249] sm:$0xe]
      %v746 = vld [vmem:[%s249 + $0x4] sm:$0xf]
      %v747 = vld [vmem:[%s249 + $0x8] sm:$0x3]
      %v748 = vld [vmem:[%s249 + $0x10] sm:$0xe]
      %v749 = vld [vmem:[%s249 + $0x14] sm:$0xf]
      %v750 = vld [vmem:[%s249 + $0x18] sm:$0x3]
      %v751 = vld [vmem:[%s249 + $0x20] sm:$0xe]
      %v752 = vld [vmem:[%s249 + $0x24] sm:$0xf]
      %v753 = vld [vmem:[%s249 + $0x28] sm:$0x3]
      %v754 = vld [vmem:[%s249 + $0x30] sm:$0xe]
      %v755 = vld [vmem:[%s249 + $0x34] sm:$0xf]
      %v756 = vld [vmem:[%s249 + $0x38] sm:$0x3]
      %v757 = vld [vmem:[%s249 + $0x40] sm:$0xe]
      %v758 = vld [vmem:[%s249 + $0x44] sm:$0xf]
      %v759 = vld [vmem:[%s249 + $0x48] sm:$0x3]
      %v760 = vld [vmem:[%s249 + $0x50] sm:$0xe]
      %v761 = vld [vmem:[%s249 + $0x54] sm:$0xf]
      %v762 = vld [vmem:[%s249 + $0x58] sm:$0x3]
      %v763 = vld [vmem:[%s249 + $0x60] sm:$0xe]
      %v764 = vld [vmem:[%s249 + $0x64] sm:$0xf]
      %v765 = vld [vmem:[%s249 + $0x68] sm:$0x3]
      %v766 = vld [vmem:[%s249 + $0x70] sm:$0xe]
      %v767 = vld [vmem:[%s249 + $0x74] sm:$0xf]
      %v768 = vld [vmem:[%s249 + $0x78] sm:$0x3]
      %vm769 = vsmask.f32 2304
      %vm770 = vsmask.f32 6416
      %vm771 = vmor %vm769, %vm770
      %v773 = vshrl.u32 %v745, 16
      %v775 = vrot.slane %v773, 5
      %v776 = vshll.u32 %v745, 16
      %v778 = vrot.slane %v776, 6
      %v779 = vor.u32 %v775, %v778
      %v780 = vrot.slane %v779, 4
      %v782 = vshrl.u32 %v746, 16
      %v784 = vrot.slane %v782, 5
      %v785 = vshll.u32 %v746, 16
      %v787 = vrot.slane %v785, 6
      %v788 = vor.u32 %v784, %v787
      %v789 = vsel %vm771, %v780, %v788
      %v790 = vrot.slane %v788, 4
      %v792 = vshrl.u32 %v747, 16
      %v794 = vrot.slane %v792, 5
      %v795 = vshll.u32 %v747, 16
      %v797 = vrot.slane %v795, 6
      %v798 = vor.u32 %v794, %v797
      %v799 = vsel %vm771, %v790, %v798
      %v801 = vshrl.u32 %v748, 16
      %v803 = vrot.slane %v801, 5
      %v804 = vshll.u32 %v748, 16
      %v806 = vrot.slane %v804, 6
      %v807 = vor.u32 %v803, %v806
      %v808 = vrot.slane %v807, 4
      %v810 = vshrl.u32 %v749, 16
      %v812 = vrot.slane %v810, 5
      %v813 = vshll.u32 %v749, 16
      %v815 = vrot.slane %v813, 6
      %v816 = vor.u32 %v812, %v815
      %v817 = vsel %vm771, %v808, %v816
      %v818 = vrot.slane %v816, 4
      %v820 = vshrl.u32 %v750, 16
      %v822 = vrot.slane %v820, 5
      %v823 = vshll.u32 %v750, 16
      %v825 = vrot.slane %v823, 6
      %v826 = vor.u32 %v822, %v825
      %v827 = vsel %vm771, %v818, %v826
      %v829 = vshrl.u32 %v751, 16
      %v831 = vrot.slane %v829, 5
      %v832 = vshll.u32 %v751, 16
      %v834 = vrot.slane %v832, 6
      %v835 = vor.u32 %v831, %v834
      %v836 = vrot.slane %v835, 4
      %v838 = vshrl.u32 %v752, 16
      %v840 = vrot.slane %v838, 5
      %v841 = vshll.u32 %v752, 16
      %v843 = vrot.slane %v841, 6
      %v844 = vor.u32 %v840, %v843
      %v845 = vsel %vm771, %v836, %v844
      %v846 = vrot.slane %v844, 4
      %v848 = vshrl.u32 %v753, 16
      %v850 = vrot.slane %v848, 5
      %v851 = vshll.u32 %v753, 16
      %v853 = vrot.slane %v851, 6
      %v854 = vor.u32 %v850, %v853
      %v855 = vsel %vm771, %v846, %v854
      %v857 = vshrl.u32 %v754, 16
      %v859 = vrot.slane %v857, 5
      %v860 = vshll.u32 %v754, 16
      %v862 = vrot.slane %v860, 6
      %v863 = vor.u32 %v859, %v862
      %v864 = vrot.slane %v863, 4
      %v866 = vshrl.u32 %v755, 16
      %v868 = vrot.slane %v866, 5
      %v869 = vshll.u32 %v755, 16
      %v871 = vrot.slane %v869, 6
      %v872 = vor.u32 %v868, %v871
      %v873 = vsel %vm771, %v864, %v872
      %v874 = vrot.slane %v872, 4
      %v876 = vshrl.u32 %v756, 16
      %v878 = vrot.slane %v876, 5
      %v879 = vshll.u32 %v756, 16
      %v881 = vrot.slane %v879, 6
      %v882 = vor.u32 %v878, %v881
      %v883 = vsel %vm771, %v874, %v882
      %v885 = vshrl.u32 %v757, 16
      %v887 = vrot.slane %v885, 5
      %v888 = vshll.u32 %v757, 16
      %v890 = vrot.slane %v888, 6
      %v891 = vor.u32 %v887, %v890
      %v892 = vrot.slane %v891, 4
      %v894 = vshrl.u32 %v758, 16
      %v896 = vrot.slane %v894, 5
      %v897 = vshll.u32 %v758, 16
      %v899 = vrot.slane %v897, 6
      %v900 = vor.u32 %v896, %v899
      %v901 = vsel %vm771, %v892, %v900
      %v902 = vrot.slane %v900, 4
      %v904 = vshrl.u32 %v759, 16
      %v906 = vrot.slane %v904, 5
      %v907 = vshll.u32 %v759, 16
      %v909 = vrot.slane %v907, 6
      %v910 = vor.u32 %v906, %v909
      %v911 = vsel %vm771, %v902, %v910
      %v913 = vshrl.u32 %v760, 16
      %v915 = vrot.slane %v913, 5
      %v916 = vshll.u32 %v760, 16
      %v918 = vrot.slane %v916, 6
      %v919 = vor.u32 %v915, %v918
      %v920 = vrot.slane %v919, 4
      %v922 = vshrl.u32 %v761, 16
      %v924 = vrot.slane %v922, 5
      %v925 = vshll.u32 %v761, 16
      %v927 = vrot.slane %v925, 6
      %v928 = vor.u32 %v924, %v927
      %v929 = vsel %vm771, %v920, %v928
      %v930 = vrot.slane %v928, 4
      %v932 = vshrl.u32 %v762, 16
      %v934 = vrot.slane %v932, 5
      %v935 = vshll.u32 %v762, 16
      %v937 = vrot.slane %v935, 6
      %v938 = vor.u32 %v934, %v937
      %v939 = vsel %vm771, %v930, %v938
      %v941 = vshrl.u32 %v763, 16
      %v943 = vrot.slane %v941, 5
      %v944 = vshll.u32 %v763, 16
      %v946 = vrot.slane %v944, 6
      %v947 = vor.u32 %v943, %v946
      %v948 = vrot.slane %v947, 4
      %v950 = vshrl.u32 %v764, 16
      %v952 = vrot.slane %v950, 5
      %v953 = vshll.u32 %v764, 16
      %v955 = vrot.slane %v953, 6
      %v956 = vor.u32 %v952, %v955
      %v957 = vsel %vm771, %v948, %v956
      %v958 = vrot.slane %v956, 4
      %v960 = vshrl.u32 %v765, 16
      %v962 = vrot.slane %v960, 5
      %v963 = vshll.u32 %v765, 16
      %v965 = vrot.slane %v963, 6
      %v966 = vor.u32 %v962, %v965
      %v967 = vsel %vm771, %v958, %v966
      %v969 = vshrl.u32 %v766, 16
      %v971 = vrot.slane %v969, 5
      %v972 = vshll.u32 %v766, 16
      %v974 = vrot.slane %v972, 6
      %v975 = vor.u32 %v971, %v974
      %v976 = vrot.slane %v975, 4
      %v978 = vshrl.u32 %v767, 16
      %v980 = vrot.slane %v978, 5
      %v981 = vshll.u32 %v767, 16
      %v983 = vrot.slane %v981, 6
      %v984 = vor.u32 %v980, %v983
      %v985 = vsel %vm771, %v976, %v984
      %v986 = vrot.slane %v984, 4
      %v988 = vshrl.u32 %v768, 16
      %v990 = vrot.slane %v988, 5
      %v991 = vshll.u32 %v768, 16
      %v993 = vrot.slane %v991, 6
      %v994 = vor.u32 %v990, %v993
      %v995 = vsel %vm771, %v986, %v994
      %996 = vrot.lane.b32.xlu0 %v789, 96
      %v997 = vpop.permute.xlu0 %996
      %998 = vrot.lane.b32.xlu0 %v799, 96
      %v999 = vpop.permute.xlu0 %998
      %1000 = vrot.lane.b32.xlu0 %v817, 96
      %v1001 = vpop.permute.xlu0 %1000
      %1002 = vrot.lane.b32.xlu0 %v827, 96
      %v1003 = vpop.permute.xlu0 %1002
      %1004 = vrot.lane.b32.xlu0 %v845, 96
      %v1005 = vpop.permute.xlu0 %1004
      %1006 = vrot.lane.b32.xlu0 %v855, 96
      %v1007 = vpop.permute.xlu0 %1006
      %1008 = vrot.lane.b32.xlu0 %v873, 96
      %v1009 = vpop.permute.xlu0 %1008
      %1010 = vrot.lane.b32.xlu0 %v883, 96
      %v1011 = vpop.permute.xlu0 %1010
      %1012 = vrot.lane.b32.xlu0 %v901, 96
      %v1013 = vpop.permute.xlu0 %1012
      %1014 = vrot.lane.b32.xlu0 %v911, 96
      %v1015 = vpop.permute.xlu0 %1014
      %1016 = vrot.lane.b32.xlu0 %v929, 96
      %v1017 = vpop.permute.xlu0 %1016
      %1018 = vrot.lane.b32.xlu0 %v939, 96
      %v1019 = vpop.permute.xlu0 %1018
      %1020 = vrot.lane.b32.xlu0 %v957, 96
      %v1021 = vpop.permute.xlu0 %1020
      %1022 = vrot.lane.b32.xlu0 %v967, 96
      %v1023 = vpop.permute.xlu0 %1022
      %1024 = vrot.lane.b32.xlu0 %v985, 96
      %v1025 = vpop.permute.xlu0 %1024
      %1026 = vrot.lane.b32.xlu0 %v995, 96
      %v1027 = vpop.permute.xlu0 %1026
      %vm1044 = vcmask 1044224
      %1045 = vst.msk [vmem:[#allocation2] sm:$0xf] %vm1044, %v997
      %1046 = vst.msk [vmem:[#allocation2 + $0x8] sm:$0xf] %vm1044, %v999
      %1047 = vst.msk [vmem:[#allocation2 + $0x10] sm:$0xf] %vm1044, %v1001
      %1048 = vst.msk [vmem:[#allocation2 + $0x18] sm:$0xf] %vm1044, %v1003
      %1049 = vst.msk [vmem:[#allocation2 + $0x20] sm:$0xf] %vm1044, %v1005
      %1050 = vst.msk [vmem:[#allocation2 + $0x28] sm:$0xf] %vm1044, %v1007
      %1051 = vst.msk [vmem:[#allocation2 + $0x30] sm:$0xf] %vm1044, %v1009
      %1052 = vst.msk [vmem:[#allocation2 + $0x38] sm:$0xf] %vm1044, %v1011
      %1053 = vst.msk [vmem:[#allocation2 + $0x40] sm:$0xf] %vm1044, %v1013
      %1054 = vst.msk [vmem:[#allocation2 + $0x48] sm:$0xf] %vm1044, %v1015
      %1055 = vst.msk [vmem:[#allocation2 + $0x50] sm:$0xf] %vm1044, %v1017
      %1056 = vst.msk [vmem:[#allocation2 + $0x58] sm:$0xf] %vm1044, %v1019
      %1057 = vst.msk [vmem:[#allocation2 + $0x60] sm:$0xf] %vm1044, %v1021
      %1058 = vst.msk [vmem:[#allocation2 + $0x68] sm:$0xf] %vm1044, %v1023
      %1059 = vst.msk [vmem:[#allocation2 + $0x70] sm:$0xf] %vm1044, %v1025
      %1060 = vst.msk [vmem:[#allocation2 + $0x78] sm:$0xf] %vm1044, %v1027
      %v1061 = vld [vmem:[%s249] sm:$0xc]
      %v1062 = vld [vmem:[%s249 + $0x4] sm:$0xf]
      %v1063 = vld [vmem:[%s249 + $0x8] sm:$0x3]
      %v1064 = vld [vmem:[%s249 + $0x10] sm:$0xc]
      %v1065 = vld [vmem:[%s249 + $0x14] sm:$0xf]
      %v1066 = vld [vmem:[%s249 + $0x18] sm:$0x3]
      %v1067 = vld [vmem:[%s249 + $0x20] sm:$0xc]
      %v1068 = vld [vmem:[%s249 + $0x24] sm:$0xf]
      %v1069 = vld [vmem:[%s249 + $0x28] sm:$0x3]
      %v1070 = vld [vmem:[%s249 + $0x30] sm:$0xc]
      %v1071 = vld [vmem:[%s249 + $0x34] sm:$0xf]
      %v1072 = vld [vmem:[%s249 + $0x38] sm:$0x3]
      %v1073 = vld [vmem:[%s249 + $0x40] sm:$0xc]
      %v1074 = vld [vmem:[%s249 + $0x44] sm:$0xf]
      %v1075 = vld [vmem:[%s249 + $0x48] sm:$0x3]
      %v1076 = vld [vmem:[%s249 + $0x50] sm:$0xc]
      %v1077 = vld [vmem:[%s249 + $0x54] sm:$0xf]
      %v1078 = vld [vmem:[%s249 + $0x58] sm:$0x3]
      %v1079 = vld [vmem:[%s249 + $0x60] sm:$0xc]
      %v1080 = vld [vmem:[%s249 + $0x64] sm:$0xf]
      %v1081 = vld [vmem:[%s249 + $0x68] sm:$0x3]
      %v1082 = vld [vmem:[%s249 + $0x70] sm:$0xc]
      %v1083 = vld [vmem:[%s249 + $0x74] sm:$0xf]
      %v1084 = vld [vmem:[%s249 + $0x78] sm:$0x3]
      %vm1109 = vcmask 1041408
      %vm1110 = vcmask 1045508
      %vm1111 = vmor %vm1109, %vm1110
      %v1112 = vrot.slane %v1061, 6
      %v1113 = vrot.slane %v1112, 4
      %v1114 = vrot.slane %v1062, 6
      %v1115 = vsel %vm1111, %v1113, %v1114
      %v1116 = vrot.slane %v1114, 4
      %v1117 = vrot.slane %v1063, 6
      %v1118 = vsel %vm1111, %v1116, %v1117
      %v1119 = vrot.slane %v1064, 6
      %v1120 = vrot.slane %v1119, 4
      %v1121 = vrot.slane %v1065, 6
      %v1122 = vsel %vm1111, %v1120, %v1121
      %v1123 = vrot.slane %v1121, 4
      %v1124 = vrot.slane %v1066, 6
      %v1125 = vsel %vm1111, %v1123, %v1124
      %v1126 = vrot.slane %v1067, 6
      %v1127 = vrot.slane %v1126, 4
      %v1128 = vrot.slane %v1068, 6
      %v1129 = vsel %vm1111, %v1127, %v1128
      %v1130 = vrot.slane %v1128, 4
      %v1131 = vrot.slane %v1069, 6
      %v1132 = vsel %vm1111, %v1130, %v1131
      %v1133 = vrot.slane %v1070, 6
      %v1134 = vrot.slane %v1133, 4
      %v1135 = vrot.slane %v1071, 6
      %v1136 = vsel %vm1111, %v1134, %v1135
      %v1137 = vrot.slane %v1135, 4
      %v1138 = vrot.slane %v1072, 6
      %v1139 = vsel %vm1111, %v1137, %v1138
      %v1140 = vrot.slane %v1073, 6
      %v1141 = vrot.slane %v1140, 4
      %v1142 = vrot.slane %v1074, 6
      %v1143 = vsel %vm1111, %v1141, %v1142
      %v1144 = vrot.slane %v1142, 4
      %v1145 = vrot.slane %v1075, 6
      %v1146 = vsel %vm1111, %v1144, %v1145
      %v1147 = vrot.slane %v1076, 6
      %v1148 = vrot.slane %v1147, 4
      %v1149 = vrot.slane %v1077, 6
      %v1150 = vsel %vm1111, %v1148, %v1149
      %v1151 = vrot.slane %v1149, 4
      %v1152 = vrot.slane %v1078, 6
      %v1153 = vsel %vm1111, %v1151, %v1152
      %v1154 = vrot.slane %v1079, 6
      %v1155 = vrot.slane %v1154, 4
      %v1156 = vrot.slane %v1080, 6
      %v1157 = vsel %vm1111, %v1155, %v1156
      %v1158 = vrot.slane %v1156, 4
      %v1159 = vrot.slane %v1081, 6
      %v1160 = vsel %vm1111, %v1158, %v1159
      %v1161 = vrot.slane %v1082, 6
      %v1162 = vrot.slane %v1161, 4
      %v1163 = vrot.slane %v1083, 6
      %v1164 = vsel %vm1111, %v1162, %v1163
      %v1165 = vrot.slane %v1163, 4
      %v1166 = vrot.slane %v1084, 6
      %v1167 = vsel %vm1111, %v1165, %v1166
      %1184 = vst.msk [vmem:[#allocation2 + $0x4] sm:$0xf] %vm272, %v1115
      %1185 = vst.msk [vmem:[#allocation2 + $0xc] sm:$0xf] %vm272, %v1118
      %1186 = vst.msk [vmem:[#allocation2 + $0x14] sm:$0xf] %vm272, %v1122
      %1187 = vst.msk [vmem:[#allocation2 + $0x1c] sm:$0xf] %vm272, %v1125
      %1188 = vst.msk [vmem:[#allocation2 + $0x24] sm:$0xf] %vm272, %v1129
      %1189 = vst.msk [vmem:[#allocation2 + $0x2c] sm:$0xf] %vm272, %v1132
      %1190 = vst.msk [vmem:[#allocation2 + $0x34] sm:$0xf] %vm272, %v1136
      %1191 = vst.msk [vmem:[#allocation2 + $0x3c] sm:$0xf] %vm272, %v1139
      %1192 = vst.msk [vmem:[#allocation2 + $0x44] sm:$0xf] %vm272, %v1143
      %1193 = vst.msk [vmem:[#allocation2 + $0x4c] sm:$0xf] %vm272, %v1146
      %1194 = vst.msk [vmem:[#allocation2 + $0x54] sm:$0xf] %vm272, %v1150
      %1195 = vst.msk [vmem:[#allocation2 + $0x5c] sm:$0xf] %vm272, %v1153
      %1196 = vst.msk [vmem:[#allocation2 + $0x64] sm:$0xf] %vm272, %v1157
      %1197 = vst.msk [vmem:[#allocation2 + $0x6c] sm:$0xf] %vm272, %v1160
      %1198 = vst.msk [vmem:[#allocation2 + $0x74] sm:$0xf] %vm272, %v1164
      %1199 = vst.msk [vmem:[#allocation2 + $0x7c] sm:$0xf] %vm272, %v1167
      %v1200 = vld [vmem:[%s249] sm:$0xc]
      %v1201 = vld [vmem:[%s249 + $0x4] sm:$0xf]
      %v1202 = vld [vmem:[%s249 + $0x8] sm:$0x7]
      %v1203 = vld [vmem:[%s249 + $0x10] sm:$0xc]
      %v1204 = vld [vmem:[%s249 + $0x14] sm:$0xf]
      %v1205 = vld [vmem:[%s249 + $0x18] sm:$0x7]
      %v1206 = vld [vmem:[%s249 + $0x20] sm:$0xc]
      %v1207 = vld [vmem:[%s249 + $0x24] sm:$0xf]
      %v1208 = vld [vmem:[%s249 + $0x28] sm:$0x7]
      %v1209 = vld [vmem:[%s249 + $0x30] sm:$0xc]
      %v1210 = vld [vmem:[%s249 + $0x34] sm:$0xf]
      %v1211 = vld [vmem:[%s249 + $0x38] sm:$0x7]
      %v1212 = vld [vmem:[%s249 + $0x40] sm:$0xc]
      %v1213 = vld [vmem:[%s249 + $0x44] sm:$0xf]
      %v1214 = vld [vmem:[%s249 + $0x48] sm:$0x7]
      %v1215 = vld [vmem:[%s249 + $0x50] sm:$0xc]
      %v1216 = vld [vmem:[%s249 + $0x54] sm:$0xf]
      %v1217 = vld [vmem:[%s249 + $0x58] sm:$0x7]
      %v1218 = vld [vmem:[%s249 + $0x60] sm:$0xc]
      %v1219 = vld [vmem:[%s249 + $0x64] sm:$0xf]
      %v1220 = vld [vmem:[%s249 + $0x68] sm:$0x7]
      %v1221 = vld [vmem:[%s249 + $0x70] sm:$0xc]
      %v1222 = vld [vmem:[%s249 + $0x74] sm:$0xf]
      %v1223 = vld [vmem:[%s249 + $0x78] sm:$0x7]
      %vm1224 = vsmask.f32 1280
      %vm1225 = vsmask.f32 5392
      %vm1226 = vmor %vm1224, %vm1225
      %v1228 = vshrl.u32 %v1200, 16
      %v1230 = vrot.slane %v1228, 6
      %v1231 = vshll.u32 %v1200, 16
      %v1233 = vrot.slane %v1231, 7
      %v1234 = vor.u32 %v1230, %v1233
      %v1235 = vrot.slane %v1234, 4
      %v1237 = vshrl.u32 %v1201, 16
      %v1239 = vrot.slane %v1237, 6
      %v1240 = vshll.u32 %v1201, 16
      %v1242 = vrot.slane %v1240, 7
      %v1243 = vor.u32 %v1239, %v1242
      %v1244 = vsel %vm1226, %v1235, %v1243
      %v1245 = vrot.slane %v1243, 4
      %v1247 = vshrl.u32 %v1202, 16
      %v1249 = vrot.slane %v1247, 6
      %v1250 = vshll.u32 %v1202, 16
      %v1252 = vrot.slane %v1250, 7
      %v1253 = vor.u32 %v1249, %v1252
      %v1254 = vsel %vm1226, %v1245, %v1253
      %v1256 = vshrl.u32 %v1203, 16
      %v1258 = vrot.slane %v1256, 6
      %v1259 = vshll.u32 %v1203, 16
      %v1261 = vrot.slane %v1259, 7
      %v1262 = vor.u32 %v1258, %v1261
      %v1263 = vrot.slane %v1262, 4
      %v1265 = vshrl.u32 %v1204, 16
      %v1267 = vrot.slane %v1265, 6
      %v1268 = vshll.u32 %v1204, 16
      %v1270 = vrot.slane %v1268, 7
      %v1271 = vor.u32 %v1267, %v1270
      %v1272 = vsel %vm1226, %v1263, %v1271
      %v1273 = vrot.slane %v1271, 4
      %v1275 = vshrl.u32 %v1205, 16
      %v1277 = vrot.slane %v1275, 6
      %v1278 = vshll.u32 %v1205, 16
      %v1280 = vrot.slane %v1278, 7
      %v1281 = vor.u32 %v1277, %v1280
      %v1282 = vsel %vm1226, %v1273, %v1281
      %v1284 = vshrl.u32 %v1206, 16
      %v1286 = vrot.slane %v1284, 6
      %v1287 = vshll.u32 %v1206, 16
      %v1289 = vrot.slane %v1287, 7
      %v1290 = vor.u32 %v1286, %v1289
      %v1291 = vrot.slane %v1290, 4
      %v1293 = vshrl.u32 %v1207, 16
      %v1295 = vrot.slane %v1293, 6
      %v1296 = vshll.u32 %v1207, 16
      %v1298 = vrot.slane %v1296, 7
      %v1299 = vor.u32 %v1295, %v1298
      %v1300 = vsel %vm1226, %v1291, %v1299
      %v1301 = vrot.slane %v1299, 4
      %v1303 = vshrl.u32 %v1208, 16
      %v1305 = vrot.slane %v1303, 6
      %v1306 = vshll.u32 %v1208, 16
      %v1308 = vrot.slane %v1306, 7
      %v1309 = vor.u32 %v1305, %v1308
      %v1310 = vsel %vm1226, %v1301, %v1309
      %v1312 = vshrl.u32 %v1209, 16
      %v1314 = vrot.slane %v1312, 6
      %v1315 = vshll.u32 %v1209, 16
      %v1317 = vrot.slane %v1315, 7
      %v1318 = vor.u32 %v1314, %v1317
      %v1319 = vrot.slane %v1318, 4
      %v1321 = vshrl.u32 %v1210, 16
      %v1323 = vrot.slane %v1321, 6
      %v1324 = vshll.u32 %v1210, 16
      %v1326 = vrot.slane %v1324, 7
      %v1327 = vor.u32 %v1323, %v1326
      %v1328 = vsel %vm1226, %v1319, %v1327
      %v1329 = vrot.slane %v1327, 4
      %v1331 = vshrl.u32 %v1211, 16
      %v1333 = vrot.slane %v1331, 6
      %v1334 = vshll.u32 %v1211, 16
      %v1336 = vrot.slane %v1334, 7
      %v1337 = vor.u32 %v1333, %v1336
      %v1338 = vsel %vm1226, %v1329, %v1337
      %v1340 = vshrl.u32 %v1212, 16
      %v1342 = vrot.slane %v1340, 6
      %v1343 = vshll.u32 %v1212, 16
      %v1345 = vrot.slane %v1343, 7
      %v1346 = vor.u32 %v1342, %v1345
      %v1347 = vrot.slane %v1346, 4
      %v1349 = vshrl.u32 %v1213, 16
      %v1351 = vrot.slane %v1349, 6
      %v1352 = vshll.u32 %v1213, 16
      %v1354 = vrot.slane %v1352, 7
      %v1355 = vor.u32 %v1351, %v1354
      %v1356 = vsel %vm1226, %v1347, %v1355
      %v1357 = vrot.slane %v1355, 4
      %v1359 = vshrl.u32 %v1214, 16
      %v1361 = vrot.slane %v1359, 6
      %v1362 = vshll.u32 %v1214, 16
      %v1364 = vrot.slane %v1362, 7
      %v1365 = vor.u32 %v1361, %v1364
      %v1366 = vsel %vm1226, %v1357, %v1365
      %v1368 = vshrl.u32 %v1215, 16
      %v1370 = vrot.slane %v1368, 6
      %v1371 = vshll.u32 %v1215, 16
      %v1373 = vrot.slane %v1371, 7
      %v1374 = vor.u32 %v1370, %v1373
      %v1375 = vrot.slane %v1374, 4
      %v1377 = vshrl.u32 %v1216, 16
      %v1379 = vrot.slane %v1377, 6
      %v1380 = vshll.u32 %v1216, 16
      %v1382 = vrot.slane %v1380, 7
      %v1383 = vor.u32 %v1379, %v1382
      %v1384 = vsel %vm1226, %v1375, %v1383
      %v1385 = vrot.slane %v1383, 4
      %v1387 = vshrl.u32 %v1217, 16
      %v1389 = vrot.slane %v1387, 6
      %v1390 = vshll.u32 %v1217, 16
      %v1392 = vrot.slane %v1390, 7
      %v1393 = vor.u32 %v1389, %v1392
      %v1394 = vsel %vm1226, %v1385, %v1393
      %v1396 = vshrl.u32 %v1218, 16
      %v1398 = vrot.slane %v1396, 6
      %v1399 = vshll.u32 %v1218, 16
      %v1401 = vrot.slane %v1399, 7
      %v1402 = vor.u32 %v1398, %v1401
      %v1403 = vrot.slane %v1402, 4
      %v1405 = vshrl.u32 %v1219, 16
      %v1407 = vrot.slane %v1405, 6
      %v1408 = vshll.u32 %v1219, 16
      %v1410 = vrot.slane %v1408, 7
      %v1411 = vor.u32 %v1407, %v1410
      %v1412 = vsel %vm1226, %v1403, %v1411
      %v1413 = vrot.slane %v1411, 4
      %v1415 = vshrl.u32 %v1220, 16
      %v1417 = vrot.slane %v1415, 6
      %v1418 = vshll.u32 %v1220, 16
      %v1420 = vrot.slane %v1418, 7
      %v1421 = vor.u32 %v1417, %v1420
      %v1422 = vsel %vm1226, %v1413, %v1421
      %v1424 = vshrl.u32 %v1221, 16
      %v1426 = vrot.slane %v1424, 6
      %v1427 = vshll.u32 %v1221, 16
      %v1429 = vrot.slane %v1427, 7
      %v1430 = vor.u32 %v1426, %v1429
      %v1431 = vrot.slane %v1430, 4
      %v1433 = vshrl.u32 %v1222, 16
      %v1435 = vrot.slane %v1433, 6
      %v1436 = vshll.u32 %v1222, 16
      %v1438 = vrot.slane %v1436, 7
      %v1439 = vor.u32 %v1435, %v1438
      %v1440 = vsel %vm1226, %v1431, %v1439
      %v1441 = vrot.slane %v1439, 4
      %v1443 = vshrl.u32 %v1223, 16
      %v1445 = vrot.slane %v1443, 6
      %v1446 = vshll.u32 %v1223, 16
      %v1448 = vrot.slane %v1446, 7
      %v1449 = vor.u32 %v1445, %v1448
      %v1450 = vsel %vm1226, %v1441, %v1449
      %1451 = vrot.lane.b32.xlu0 %v1244, 32
      %v1452 = vpop.permute.xlu0 %1451
      %1453 = vrot.lane.b32.xlu0 %v1254, 32
      %v1454 = vpop.permute.xlu0 %1453
      %1455 = vrot.lane.b32.xlu0 %v1272, 32
      %v1456 = vpop.permute.xlu0 %1455
      %1457 = vrot.lane.b32.xlu0 %v1282, 32
      %v1458 = vpop.permute.xlu0 %1457
      %1459 = vrot.lane.b32.xlu0 %v1300, 32
      %v1460 = vpop.permute.xlu0 %1459
      %1461 = vrot.lane.b32.xlu0 %v1310, 32
      %v1462 = vpop.permute.xlu0 %1461
      %1463 = vrot.lane.b32.xlu0 %v1328, 32
      %v1464 = vpop.permute.xlu0 %1463
      %1465 = vrot.lane.b32.xlu0 %v1338, 32
      %v1466 = vpop.permute.xlu0 %1465
      %1467 = vrot.lane.b32.xlu0 %v1356, 32
      %v1468 = vpop.permute.xlu0 %1467
      %1469 = vrot.lane.b32.xlu0 %v1366, 32
      %v1470 = vpop.permute.xlu0 %1469
      %1471 = vrot.lane.b32.xlu0 %v1384, 32
      %v1472 = vpop.permute.xlu0 %1471
      %1473 = vrot.lane.b32.xlu0 %v1394, 32
      %v1474 = vpop.permute.xlu0 %1473
      %1475 = vrot.lane.b32.xlu0 %v1412, 32
      %v1476 = vpop.permute.xlu0 %1475
      %1477 = vrot.lane.b32.xlu0 %v1422, 32
      %v1478 = vpop.permute.xlu0 %1477
      %1479 = vrot.lane.b32.xlu0 %v1440, 32
      %v1480 = vpop.permute.xlu0 %1479
      %1481 = vrot.lane.b32.xlu0 %v1450, 32
      %v1482 = vpop.permute.xlu0 %1481
      %1499 = vst.msk [vmem:[#allocation2 + $0x4] sm:$0xf] %vm556, %v1452
      %1500 = vst.msk [vmem:[#allocation2 + $0xc] sm:$0xf] %vm556, %v1454
      %1501 = vst.msk [vmem:[#allocation2 + $0x14] sm:$0xf] %vm556, %v1456
      %1502 = vst.msk [vmem:[#allocation2 + $0x1c] sm:$0xf] %vm556, %v1458
      %1503 = vst.msk [vmem:[#allocation2 + $0x24] sm:$0xf] %vm556, %v1460
      %1504 = vst.msk [vmem:[#allocation2 + $0x2c] sm:$0xf] %vm556, %v1462
      %1505 = vst.msk [vmem:[#allocation2 + $0x34] sm:$0xf] %vm556, %v1464
      %1506 = vst.msk [vmem:[#allocation2 + $0x3c] sm:$0xf] %vm556, %v1466
      %1507 = vst.msk [vmem:[#allocation2 + $0x44] sm:$0xf] %vm556, %v1468
      %1508 = vst.msk [vmem:[#allocation2 + $0x4c] sm:$0xf] %vm556, %v1470
      %1509 = vst.msk [vmem:[#allocation2 + $0x54] sm:$0xf] %vm556, %v1472
      %1510 = vst.msk [vmem:[#allocation2 + $0x5c] sm:$0xf] %vm556, %v1474
      %1511 = vst.msk [vmem:[#allocation2 + $0x64] sm:$0xf] %vm556, %v1476
      %1512 = vst.msk [vmem:[#allocation2 + $0x6c] sm:$0xf] %vm556, %v1478
      %1513 = vst.msk [vmem:[#allocation2 + $0x74] sm:$0xf] %vm556, %v1480
      %1514 = vst.msk [vmem:[#allocation2 + $0x7c] sm:$0xf] %vm556, %v1482
      %v1515 = vld [vmem:[%s249] sm:$0x8]
      %v1516 = vld [vmem:[%s249 + $0x4] sm:$0xf]
      %v1517 = vld [vmem:[%s249 + $0x8] sm:$0x7]
      %v1518 = vld [vmem:[%s249 + $0x10] sm:$0x8]
      %v1519 = vld [vmem:[%s249 + $0x14] sm:$0xf]
      %v1520 = vld [vmem:[%s249 + $0x18] sm:$0x7]
      %v1521 = vld [vmem:[%s249 + $0x20] sm:$0x8]
      %v1522 = vld [vmem:[%s249 + $0x24] sm:$0xf]
      %v1523 = vld [vmem:[%s249 + $0x28] sm:$0x7]
      %v1524 = vld [vmem:[%s249 + $0x30] sm:$0x8]
      %v1525 = vld [vmem:[%s249 + $0x34] sm:$0xf]
      %v1526 = vld [vmem:[%s249 + $0x38] sm:$0x7]
      %v1527 = vld [vmem:[%s249 + $0x40] sm:$0x8]
      %v1528 = vld [vmem:[%s249 + $0x44] sm:$0xf]
      %v1529 = vld [vmem:[%s249 + $0x48] sm:$0x7]
      %v1530 = vld [vmem:[%s249 + $0x50] sm:$0x8]
      %v1531 = vld [vmem:[%s249 + $0x54] sm:$0xf]
      %v1532 = vld [vmem:[%s249 + $0x58] sm:$0x7]
      %v1533 = vld [vmem:[%s249 + $0x60] sm:$0x8]
      %v1534 = vld [vmem:[%s249 + $0x64] sm:$0xf]
      %v1535 = vld [vmem:[%s249 + $0x68] sm:$0x7]
      %v1536 = vld [vmem:[%s249 + $0x70] sm:$0x8]
      %v1537 = vld [vmem:[%s249 + $0x74] sm:$0xf]
      %v1538 = vld [vmem:[%s249 + $0x78] sm:$0x7]
      %vm1563 = vcmask 1040384
      %vm1564 = vcmask 1044484
      %vm1565 = vmor %vm1563, %vm1564
      %v1566 = vrot.slane %v1515, 7
      %v1567 = vrot.slane %v1566, 4
      %v1568 = vrot.slane %v1516, 7
      %v1569 = vsel %vm1565, %v1567, %v1568
      %v1570 = vrot.slane %v1568, 4
      %v1571 = vrot.slane %v1517, 7
      %v1572 = vsel %vm1565, %v1570, %v1571
      %v1573 = vrot.slane %v1518, 7
      %v1574 = vrot.slane %v1573, 4
      %v1575 = vrot.slane %v1519, 7
      %v1576 = vsel %vm1565, %v1574, %v1575
      %v1577 = vrot.slane %v1575, 4
      %v1578 = vrot.slane %v1520, 7
      %v1579 = vsel %vm1565, %v1577, %v1578
      %v1580 = vrot.slane %v1521, 7
      %v1581 = vrot.slane %v1580, 4
      %v1582 = vrot.slane %v1522, 7
      %v1583 = vsel %vm1565, %v1581, %v1582
      %v1584 = vrot.slane %v1582, 4
      %v1585 = vrot.slane %v1523, 7
      %v1586 = vsel %vm1565, %v1584, %v1585
      %v1587 = vrot.slane %v1524, 7
      %v1588 = vrot.slane %v1587, 4
      %v1589 = vrot.slane %v1525, 7
      %v1590 = vsel %vm1565, %v1588, %v1589
      %v1591 = vrot.slane %v1589, 4
      %v1592 = vrot.slane %v1526, 7
      %v1593 = vsel %vm1565, %v1591, %v1592
      %v1594 = vrot.slane %v1527, 7
      %v1595 = vrot.slane %v1594, 4
      %v1596 = vrot.slane %v1528, 7
      %v1597 = vsel %vm1565, %v1595, %v1596
      %v1598 = vrot.slane %v1596, 4
      %v1599 = vrot.slane %v1529, 7
      %v1600 = vsel %vm1565, %v1598, %v1599
      %v1601 = vrot.slane %v1530, 7
      %v1602 = vrot.slane %v1601, 4
      %v1603 = vrot.slane %v1531, 7
      %v1604 = vsel %vm1565, %v1602, %v1603
      %v1605 = vrot.slane %v1603, 4
      %v1606 = vrot.slane %v1532, 7
      %v1607 = vsel %vm1565, %v1605, %v1606
      %v1608 = vrot.slane %v1533, 7
      %v1609 = vrot.slane %v1608, 4
      %v1610 = vrot.slane %v1534, 7
      %v1611 = vsel %vm1565, %v1609, %v1610
      %v1612 = vrot.slane %v1610, 4
      %v1613 = vrot.slane %v1535, 7
      %v1614 = vsel %vm1565, %v1612, %v1613
      %v1615 = vrot.slane %v1536, 7
      %v1616 = vrot.slane %v1615, 4
      %v1617 = vrot.slane %v1537, 7
      %v1618 = vsel %vm1565, %v1616, %v1617
      %v1619 = vrot.slane %v1617, 4
      %v1620 = vrot.slane %v1538, 7
      %v1621 = vsel %vm1565, %v1619, %v1620
      %1622 = vrot.lane.b32.xlu0 %v1569, 64
      %v1623 = vpop.permute.xlu0 %1622
      %1624 = vrot.lane.b32.xlu0 %v1572, 64
      %v1625 = vpop.permute.xlu0 %1624
      %1626 = vrot.lane.b32.xlu0 %v1576, 64
      %v1627 = vpop.permute.xlu0 %1626
      %1628 = vrot.lane.b32.xlu0 %v1579, 64
      %v1629 = vpop.permute.xlu0 %1628
      %1630 = vrot.lane.b32.xlu0 %v1583, 64
      %v1631 = vpop.permute.xlu0 %1630
      %1632 = vrot.lane.b32.xlu0 %v1586, 64
      %v1633 = vpop.permute.xlu0 %1632
      %1634 = vrot.lane.b32.xlu0 %v1590, 64
      %v1635 = vpop.permute.xlu0 %1634
      %1636 = vrot.lane.b32.xlu0 %v1593, 64
      %v1637 = vpop.permute.xlu0 %1636
      %1638 = vrot.lane.b32.xlu0 %v1597, 64
      %v1639 = vpop.permute.xlu0 %1638
      %1640 = vrot.lane.b32.xlu0 %v1600, 64
      %v1641 = vpop.permute.xlu0 %1640
      %1642 = vrot.lane.b32.xlu0 %v1604, 64
      %v1643 = vpop.permute.xlu0 %1642
      %1644 = vrot.lane.b32.xlu0 %v1607, 64
      %v1645 = vpop.permute.xlu0 %1644
      %1646 = vrot.lane.b32.xlu0 %v1611, 64
      %v1647 = vpop.permute.xlu0 %1646
      %1648 = vrot.lane.b32.xlu0 %v1614, 64
      %v1649 = vpop.permute.xlu0 %1648
      %1650 = vrot.lane.b32.xlu0 %v1618, 64
      %v1651 = vpop.permute.xlu0 %1650
      %1652 = vrot.lane.b32.xlu0 %v1621, 64
      %v1653 = vpop.permute.xlu0 %1652
      %1670 = vst.msk [vmem:[#allocation2 + $0x4] sm:$0xf] %vm728, %v1623
      %1671 = vst.msk [vmem:[#allocation2 + $0xc] sm:$0xf] %vm728, %v1625
      %1672 = vst.msk [vmem:[#allocation2 + $0x14] sm:$0xf] %vm728, %v1627
      %1673 = vst.msk [vmem:[#allocation2 + $0x1c] sm:$0xf] %vm728, %v1629
      %1674 = vst.msk [vmem:[#allocation2 + $0x24] sm:$0xf] %vm728, %v1631
      %1675 = vst.msk [vmem:[#allocation2 + $0x2c] sm:$0xf] %vm728, %v1633
      %1676 = vst.msk [vmem:[#allocation2 + $0x34] sm:$0xf] %vm728, %v1635
      %1677 = vst.msk [vmem:[#allocation2 + $0x3c] sm:$0xf] %vm728, %v1637
      %1678 = vst.msk [vmem:[#allocation2 + $0x44] sm:$0xf] %vm728, %v1639
      %1679 = vst.msk [vmem:[#allocation2 + $0x4c] sm:$0xf] %vm728, %v1641
      %1680 = vst.msk [vmem:[#allocation2 + $0x54] sm:$0xf] %vm728, %v1643
      %1681 = vst.msk [vmem:[#allocation2 + $0x5c] sm:$0xf] %vm728, %v1645
      %1682 = vst.msk [vmem:[#allocation2 + $0x64] sm:$0xf] %vm728, %v1647
      %1683 = vst.msk [vmem:[#allocation2 + $0x6c] sm:$0xf] %vm728, %v1649
      %1684 = vst.msk [vmem:[#allocation2 + $0x74] sm:$0xf] %vm728, %v1651
      %1685 = vst.msk [vmem:[#allocation2 + $0x7c] sm:$0xf] %vm728, %v1653
      %v1686 = vld [vmem:[%s249] sm:$0x8]
      %v1687 = vld [vmem:[%s249 + $0x4] sm:$0xf]
      %v1688 = vld [vmem:[%s249 + $0x8] sm:$0xf]
      %v1689 = vld [vmem:[%s249 + $0x10] sm:$0x8]
      %v1690 = vld [vmem:[%s249 + $0x14] sm:$0xf]
      %v1691 = vld [vmem:[%s249 + $0x18] sm:$0xf]
      %v1692 = vld [vmem:[%s249 + $0x20] sm:$0x8]
      %v1693 = vld [vmem:[%s249 + $0x24] sm:$0xf]
      %v1694 = vld [vmem:[%s249 + $0x28] sm:$0xf]
      %v1695 = vld [vmem:[%s249 + $0x30] sm:$0x8]
      %v1696 = vld [vmem:[%s249 + $0x34] sm:$0xf]
      %v1697 = vld [vmem:[%s249 + $0x38] sm:$0xf]
      %v1698 = vld [vmem:[%s249 + $0x40] sm:$0x8]
      %v1699 = vld [vmem:[%s249 + $0x44] sm:$0xf]
      %v1700 = vld [vmem:[%s249 + $0x48] sm:$0xf]
      %v1701 = vld [vmem:[%s249 + $0x50] sm:$0x8]
      %v1702 = vld [vmem:[%s249 + $0x54] sm:$0xf]
      %v1703 = vld [vmem:[%s249 + $0x58] sm:$0xf]
      %v1704 = vld [vmem:[%s249 + $0x60] sm:$0x8]
      %v1705 = vld [vmem:[%s249 + $0x64] sm:$0xf]
      %v1706 = vld [vmem:[%s249 + $0x68] sm:$0xf]
      %v1707 = vld [vmem:[%s249 + $0x70] sm:$0x8]
      %v1708 = vld [vmem:[%s249 + $0x74] sm:$0xf]
      %v1709 = vld [vmem:[%s249 + $0x78] sm:$0xf]
      %vm1710 = vsmask.f32 256
      %vm1711 = vsmask.f32 4368
      %vm1712 = vmor %vm1710, %vm1711
      %v1714 = vshrl.u32 %v1686, 16
      %v1716 = vrot.slane %v1714, 7
      %v1717 = vrot.slane %v1716, 4
      %v1719 = vshrl.u32 %v1687, 16
      %v1721 = vrot.slane %v1719, 7
      %v1722 = vshll.u32 %v1687, 16
      %v1724 = vor.u32 %v1721, %v1722
      %v1725 = vsel %vm1712, %v1717, %v1724
      %v1726 = vrot.slane %v1721, 4
      %v1728 = vshrl.u32 %v1688, 16
      %v1730 = vrot.slane %v1728, 7
      %v1731 = vshll.u32 %v1688, 16
      %v1733 = vor.u32 %v1730, %v1731
      %v1734 = vsel %vm1712, %v1726, %v1733
      %v1736 = vshrl.u32 %v1689, 16
      %v1738 = vrot.slane %v1736, 7
      %v1739 = vrot.slane %v1738, 4
      %v1741 = vshrl.u32 %v1690, 16
      %v1743 = vrot.slane %v1741, 7
      %v1744 = vshll.u32 %v1690, 16
      %v1746 = vor.u32 %v1743, %v1744
      %v1747 = vsel %vm1712, %v1739, %v1746
      %v1748 = vrot.slane %v1743, 4
      %v1750 = vshrl.u32 %v1691, 16
      %v1752 = vrot.slane %v1750, 7
      %v1753 = vshll.u32 %v1691, 16
      %v1755 = vor.u32 %v1752, %v1753
      %v1756 = vsel %vm1712, %v1748, %v1755
      %v1758 = vshrl.u32 %v1692, 16
      %v1760 = vrot.slane %v1758, 7
      %v1761 = vrot.slane %v1760, 4
      %v1763 = vshrl.u32 %v1693, 16
      %v1765 = vrot.slane %v1763, 7
      %v1766 = vshll.u32 %v1693, 16
      %v1768 = vor.u32 %v1765, %v1766
      %v1769 = vsel %vm1712, %v1761, %v1768
      %v1770 = vrot.slane %v1765, 4
      %v1772 = vshrl.u32 %v1694, 16
      %v1774 = vrot.slane %v1772, 7
      %v1775 = vshll.u32 %v1694, 16
      %v1777 = vor.u32 %v1774, %v1775
      %v1778 = vsel %vm1712, %v1770, %v1777
      %v1780 = vshrl.u32 %v1695, 16
      %v1782 = vrot.slane %v1780, 7
      %v1783 = vrot.slane %v1782, 4
      %v1785 = vshrl.u32 %v1696, 16
      %v1787 = vrot.slane %v1785, 7
      %v1788 = vshll.u32 %v1696, 16
      %v1790 = vor.u32 %v1787, %v1788
      %v1791 = vsel %vm1712, %v1783, %v1790
      %v1792 = vrot.slane %v1787, 4
      %v1794 = vshrl.u32 %v1697, 16
      %v1796 = vrot.slane %v1794, 7
      %v1797 = vshll.u32 %v1697, 16
      %v1799 = vor.u32 %v1796, %v1797
      %v1800 = vsel %vm1712, %v1792, %v1799
      %v1802 = vshrl.u32 %v1698, 16
      %v1804 = vrot.slane %v1802, 7
      %v1805 = vrot.slane %v1804, 4
      %v1807 = vshrl.u32 %v1699, 16
      %v1809 = vrot.slane %v1807, 7
      %v1810 = vshll.u32 %v1699, 16
      %v1812 = vor.u32 %v1809, %v1810
      %v1813 = vsel %vm1712, %v1805, %v1812
      %v1814 = vrot.slane %v1809, 4
      %v1816 = vshrl.u32 %v1700, 16
      %v1818 = vrot.slane %v1816, 7
      %v1819 = vshll.u32 %v1700, 16
      %v1821 = vor.u32 %v1818, %v1819
      %v1822 = vsel %vm1712, %v1814, %v1821
      %v1824 = vshrl.u32 %v1701, 16
      %v1826 = vrot.slane %v1824, 7
      %v1827 = vrot.slane %v1826, 4
      %v1829 = vshrl.u32 %v1702, 16
      %v1831 = vrot.slane %v1829, 7
      %v1832 = vshll.u32 %v1702, 16
      %v1834 = vor.u32 %v1831, %v1832
      %v1835 = vsel %vm1712, %v1827, %v1834
      %v1836 = vrot.slane %v1831, 4
      %v1838 = vshrl.u32 %v1703, 16
      %v1840 = vrot.slane %v1838, 7
      %v1841 = vshll.u32 %v1703, 16
      %v1843 = vor.u32 %v1840, %v1841
      %v1844 = vsel %vm1712, %v1836, %v1843
      %v1846 = vshrl.u32 %v1704, 16
      %v1848 = vrot.slane %v1846, 7
      %v1849 = vrot.slane %v1848, 4
      %v1851 = vshrl.u32 %v1705, 16
      %v1853 = vrot.slane %v1851, 7
      %v1854 = vshll.u32 %v1705, 16
      %v1856 = vor.u32 %v1853, %v1854
      %v1857 = vsel %vm1712, %v1849, %v1856
      %v1858 = vrot.slane %v1853, 4
      %v1860 = vshrl.u32 %v1706, 16
      %v1862 = vrot.slane %v1860, 7
      %v1863 = vshll.u32 %v1706, 16
      %v1865 = vor.u32 %v1862, %v1863
      %v1866 = vsel %vm1712, %v1858, %v1865
      %v1868 = vshrl.u32 %v1707, 16
      %v1870 = vrot.slane %v1868, 7
      %v1871 = vrot.slane %v1870, 4
      %v1873 = vshrl.u32 %v1708, 16
      %v1875 = vrot.slane %v1873, 7
      %v1876 = vshll.u32 %v1708, 16
      %v1878 = vor.u32 %v1875, %v1876
      %v1879 = vsel %vm1712, %v1871, %v1878
      %v1880 = vrot.slane %v1875, 4
      %v1882 = vshrl.u32 %v1709, 16
      %v1884 = vrot.slane %v1882, 7
      %v1885 = vshll.u32 %v1709, 16
      %v1887 = vor.u32 %v1884, %v1885
      %v1888 = vsel %vm1712, %v1880, %v1887
      %1889 = vrot.lane.b32.xlu0 %v1725, 96
      %v1890 = vpop.permute.xlu0 %1889
      %1891 = vrot.lane.b32.xlu0 %v1734, 96
      %v1892 = vpop.permute.xlu0 %1891
      %1893 = vrot.lane.b32.xlu0 %v1747, 96
      %v1894 = vpop.permute.xlu0 %1893
      %1895 = vrot.lane.b32.xlu0 %v1756, 96
      %v1896 = vpop.permute.xlu0 %1895
      %1897 = vrot.lane.b32.xlu0 %v1769, 96
      %v1898 = vpop.permute.xlu0 %1897
      %1899 = vrot.lane.b32.xlu0 %v1778, 96
      %v1900 = vpop.permute.xlu0 %1899
      %1901 = vrot.lane.b32.xlu0 %v1791, 96
      %v1902 = vpop.permute.xlu0 %1901
      %1903 = vrot.lane.b32.xlu0 %v1800, 96
      %v1904 = vpop.permute.xlu0 %1903
      %1905 = vrot.lane.b32.xlu0 %v1813, 96
      %v1906 = vpop.permute.xlu0 %1905
      %1907 = vrot.lane.b32.xlu0 %v1822, 96
      %v1908 = vpop.permute.xlu0 %1907
      %1909 = vrot.lane.b32.xlu0 %v1835, 96
      %v1910 = vpop.permute.xlu0 %1909
      %1911 = vrot.lane.b32.xlu0 %v1844, 96
      %v1912 = vpop.permute.xlu0 %1911
      %1913 = vrot.lane.b32.xlu0 %v1857, 96
      %v1914 = vpop.permute.xlu0 %1913
      %1915 = vrot.lane.b32.xlu0 %v1866, 96
      %v1916 = vpop.permute.xlu0 %1915
      %1917 = vrot.lane.b32.xlu0 %v1879, 96
      %v1918 = vpop.permute.xlu0 %1917
      %1919 = vrot.lane.b32.xlu0 %v1888, 96
      %v1920 = vpop.permute.xlu0 %1919
      %1937 = vst.msk [vmem:[#allocation2 + $0x4] sm:$0xf] %vm1044, %v1890
      %1938 = vst.msk [vmem:[#allocation2 + $0xc] sm:$0xf] %vm1044, %v1892
      %1939 = vst.msk [vmem:[#allocation2 + $0x14] sm:$0xf] %vm1044, %v1894
      %1940 = vst.msk [vmem:[#allocation2 + $0x1c] sm:$0xf] %vm1044, %v1896
      %1941 = vst.msk [vmem:[#allocation2 + $0x24] sm:$0xf] %vm1044, %v1898
      %1942 = vst.msk [vmem:[#allocation2 + $0x2c] sm:$0xf] %vm1044, %v1900
      %1943 = vst.msk [vmem:[#allocation2 + $0x34] sm:$0xf] %vm1044, %v1902
      %1944 = vst.msk [vmem:[#allocation2 + $0x3c] sm:$0xf] %vm1044, %v1904
      %1945 = vst.msk [vmem:[#allocation2 + $0x44] sm:$0xf] %vm1044, %v1906
      %1946 = vst.msk [vmem:[#allocation2 + $0x4c] sm:$0xf] %vm1044, %v1908
      %1947 = vst.msk [vmem:[#allocation2 + $0x54] sm:$0xf] %vm1044, %v1910
      %1948 = vst.msk [vmem:[#allocation2 + $0x5c] sm:$0xf] %vm1044, %v1912
      %1949 = vst.msk [vmem:[#allocation2 + $0x64] sm:$0xf] %vm1044, %v1914
      %1950 = vst.msk [vmem:[#allocation2 + $0x6c] sm:$0xf] %vm1044, %v1916
      %1951 = vst.msk [vmem:[#allocation2 + $0x74] sm:$0xf] %vm1044, %v1918
      %1952 = vst.msk [vmem:[#allocation2 + $0x7c] sm:$0xf] %vm1044, %v1920
      %v1953 = vld [vmem:[#allocation2] sm:$0xff]
      %v1954 = vld [vmem:[#allocation2 + $0x8] sm:$0xff]
      %v1955 = vld [vmem:[#allocation2 + $0x10] sm:$0xff]
      %v1956 = vld [vmem:[#allocation2 + $0x18] sm:$0xff]
      %v1957 = vld [vmem:[#allocation2 + $0x20] sm:$0xff]
      %v1958 = vld [vmem:[#allocation2 + $0x28] sm:$0xff]
      %v1959 = vld [vmem:[#allocation2 + $0x30] sm:$0xff]
      %v1960 = vld [vmem:[#allocation2 + $0x38] sm:$0xff]
      %v1961 = vld [vmem:[#allocation2 + $0x40] sm:$0xff]
      %v1962 = vld [vmem:[#allocation2 + $0x48] sm:$0xff]
      %v1963 = vld [vmem:[#allocation2 + $0x50] sm:$0xff]
      %v1964 = vld [vmem:[#allocation2 + $0x58] sm:$0xff]
      %v1965 = vld [vmem:[#allocation2 + $0x60] sm:$0xff]
      %v1966 = vld [vmem:[#allocation2 + $0x68] sm:$0xff]
      %v1967 = vld [vmem:[#allocation2 + $0x70] sm:$0xff]
      %v1968 = vld [vmem:[#allocation2 + $0x78] sm:$0xff]
      %v1969 = vld [vmem:[%s1] sm:$0xf]
      %v1970 = vld [vmem:[%s1 + $0x4] sm:$0xf]
      %v1971 = vld [vmem:[%s1 + $0x8] sm:$0xf]
      %v1972 = vld [vmem:[%s1 + $0xc] sm:$0xf]
      %v1973 = vld [vmem:[%s1 + $0x10] sm:$0xf]
      %v1974 = vld [vmem:[%s1 + $0x14] sm:$0xf]
      %v1975 = vld [vmem:[%s1 + $0x18] sm:$0xf]
      %v1976 = vld [vmem:[%s1 + $0x1c] sm:$0xf]
      %v1977 = vld [vmem:[%s1 + $0x20] sm:$0xf]
      %v1978 = vld [vmem:[%s1 + $0x24] sm:$0xf]
      %v1979 = vld [vmem:[%s1 + $0x28] sm:$0xf]
      %v1980 = vld [vmem:[%s1 + $0x2c] sm:$0xf]
      %v1981 = vld [vmem:[%s1 + $0x30] sm:$0xf]
      %v1982 = vld [vmem:[%s1 + $0x34] sm:$0xf]
      %v1983 = vld [vmem:[%s1 + $0x38] sm:$0xf]
      %v1984 = vld [vmem:[%s1 + $0x3c] sm:$0xf]
      %v1985 = vld [vmem:[%s1 + $0x40] sm:$0xf]
      %v1986 = vld [vmem:[%s1 + $0x44] sm:$0xf]
      %v1987 = vld [vmem:[%s1 + $0x48] sm:$0xf]
      %v1988 = vld [vmem:[%s1 + $0x4c] sm:$0xf]
      %v1989 = vld [vmem:[%s1 + $0x50] sm:$0xf]
      %v1990 = vld [vmem:[%s1 + $0x54] sm:$0xf]
      %v1991 = vld [vmem:[%s1 + $0x58] sm:$0xf]
      %v1992 = vld [vmem:[%s1 + $0x5c] sm:$0xf]
      %v1993 = vld [vmem:[%s1 + $0x60] sm:$0xf]
      %v1994 = vld [vmem:[%s1 + $0x64] sm:$0xf]
      %v1995 = vld [vmem:[%s1 + $0x68] sm:$0xf]
      %v1996 = vld [vmem:[%s1 + $0x6c] sm:$0xf]
      %v1997 = vld [vmem:[%s1 + $0x70] sm:$0xf]
      %v1998 = vld [vmem:[%s1 + $0x74] sm:$0xf]
      %v1999 = vld [vmem:[%s1 + $0x78] sm:$0xf]
      %v2000 = vld [vmem:[%s1 + $0x7c] sm:$0xf]
      %v2017 = vunpack.c.l.b16 %v1953
      %v2018 = vunpack.c.h.b16 %v1953
      %v2019 = vunpack.c.l.b16 %v1954
      %v2020 = vunpack.c.h.b16 %v1954
      %v2021 = vunpack.c.l.b16 %v1955
      %v2022 = vunpack.c.h.b16 %v1955
      %v2023 = vunpack.c.l.b16 %v1956
      %v2024 = vunpack.c.h.b16 %v1956
      %v2025 = vunpack.c.l.b16 %v1957
      %v2026 = vunpack.c.h.b16 %v1957
      %v2027 = vunpack.c.l.b16 %v1958
      %v2028 = vunpack.c.h.b16 %v1958
      %v2029 = vunpack.c.l.b16 %v1959
      %v2030 = vunpack.c.h.b16 %v1959
      %v2031 = vunpack.c.l.b16 %v1960
      %v2032 = vunpack.c.h.b16 %v1960
      %v2033 = vunpack.c.l.b16 %v1961
      %v2034 = vunpack.c.h.b16 %v1961
      %v2035 = vunpack.c.l.b16 %v1962
      %v2036 = vunpack.c.h.b16 %v1962
      %v2037 = vunpack.c.l.b16 %v1963
      %v2038 = vunpack.c.h.b16 %v1963
      %v2039 = vunpack.c.l.b16 %v1964
      %v2040 = vunpack.c.h.b16 %v1964
      %v2041 = vunpack.c.l.b16 %v1965
      %v2042 = vunpack.c.h.b16 %v1965
      %v2043 = vunpack.c.l.b16 %v1966
      %v2044 = vunpack.c.h.b16 %v1966
      %v2045 = vunpack.c.l.b16 %v1967
      %v2046 = vunpack.c.h.b16 %v1967
      %v2047 = vunpack.c.l.b16 %v1968
      %v2048 = vunpack.c.h.b16 %v1968
      %v2049 = vpack.c.b16 %v2019, %v2017
      %v2050 = vpack.c.b16 %v2020, %v2018
      %v2051 = vpack.c.b16 %v2023, %v2021
      %v2052 = vpack.c.b16 %v2024, %v2022
      %v2053 = vpack.c.b16 %v2027, %v2025
      %v2054 = vpack.c.b16 %v2028, %v2026
      %v2055 = vpack.c.b16 %v2031, %v2029
      %v2056 = vpack.c.b16 %v2032, %v2030
      %v2057 = vpack.c.b16 %v2035, %v2033
      %v2058 = vpack.c.b16 %v2036, %v2034
      %v2059 = vpack.c.b16 %v2039, %v2037
      %v2060 = vpack.c.b16 %v2040, %v2038
      %v2061 = vpack.c.b16 %v2043, %v2041
      %v2062 = vpack.c.b16 %v2044, %v2042
      %v2063 = vpack.c.b16 %v2047, %v2045
      %v2064 = vpack.c.b16 %v2048, %v2046
      %v2113 = vunpack.c.l.b16 %v1969
      %v2114 = vunpack.c.l.b16 %v1970
      %v2115 = vunpack.c.l.b16 %v1971
      %v2116 = vunpack.c.l.b16 %v1972
      %v2117 = vunpack.c.l.b16 %v1973
      %v2118 = vunpack.c.l.b16 %v1974
      %v2119 = vunpack.c.l.b16 %v1975
      %v2120 = vunpack.c.l.b16 %v1976
      %v2121 = vunpack.c.l.b16 %v1977
      %v2122 = vunpack.c.l.b16 %v1978
      %v2123 = vunpack.c.l.b16 %v1979
      %v2124 = vunpack.c.l.b16 %v1980
      %v2125 = vunpack.c.l.b16 %v1981
      %v2126 = vunpack.c.l.b16 %v1982
      %v2127 = vunpack.c.l.b16 %v1983
      %v2128 = vunpack.c.l.b16 %v1984
      %v2129 = vunpack.c.l.b16 %v1985
      %v2130 = vunpack.c.l.b16 %v1986
      %v2131 = vunpack.c.l.b16 %v1987
      %v2132 = vunpack.c.l.b16 %v1988
      %v2133 = vunpack.c.l.b16 %v1989
      %v2134 = vunpack.c.l.b16 %v1990
      %v2135 = vunpack.c.l.b16 %v1991
      %v2136 = vunpack.c.l.b16 %v1992
      %v2137 = vunpack.c.l.b16 %v1993
      %v2138 = vunpack.c.l.b16 %v1994
      %v2139 = vunpack.c.l.b16 %v1995
      %v2140 = vunpack.c.l.b16 %v1996
      %v2141 = vunpack.c.l.b16 %v1997
      %v2142 = vunpack.c.l.b16 %v1998
      %v2143 = vunpack.c.l.b16 %v1999
      %v2144 = vunpack.c.l.b16 %v2000
      %v2145 = vpack.c.b16 %v2114, %v2113
      %v2146 = vpack.c.b16 %v2116, %v2115
      %v2147 = vpack.c.b16 %v2118, %v2117
      %v2148 = vpack.c.b16 %v2120, %v2119
      %v2149 = vpack.c.b16 %v2122, %v2121
      %v2150 = vpack.c.b16 %v2124, %v2123
      %v2151 = vpack.c.b16 %v2126, %v2125
      %v2152 = vpack.c.b16 %v2128, %v2127
      %v2153 = vpack.c.b16 %v2130, %v2129
      %v2154 = vpack.c.b16 %v2132, %v2131
      %v2155 = vpack.c.b16 %v2134, %v2133
      %v2156 = vpack.c.b16 %v2136, %v2135
      %v2157 = vpack.c.b16 %v2138, %v2137
      %v2158 = vpack.c.b16 %v2140, %v2139
      %v2159 = vpack.c.b16 %v2142, %v2141
      %v2160 = vpack.c.b16 %v2144, %v2143
      %2177 = vmatprep.subr.bf16.mxu0 0
      %2178 = vmatpush1.bf16.msra.mxu0 %v2152
      %2179 = vmatprep.subr.bf16.mxu0 0
      %2180 = vmatpush1.bf16.msra.mxu0 %v2151
      %2181 = vmatprep.subr.bf16.mxu0 0
      %2182 = vmatpush1.bf16.msra.mxu0 %v2150
      %2183 = vmatprep.subr.bf16.mxu0 0
      %2184 = vmatpush1.bf16.msra.mxu0 %v2149
      %2185 = vmatprep.subr.bf16.mxu0 0
      %2186 = vmatpush1.bf16.msra.mxu0 %v2148
      %2187 = vmatprep.subr.bf16.mxu0 0
      %2188 = vmatpush1.bf16.msra.mxu0 %v2147
      %2189 = vmatprep.subr.bf16.mxu0 0
      %2190 = vmatpush1.bf16.msra.mxu0 %v2146
      %2191 = vmatprep.subr.bf16.mxu0 0
      %2192 = vmatpush1.bf16.msra.mxu0 %v2145
      %2193 = vmatprep.subr.bf16.mxu0 0
      %2194 = vmatpush2.bf16.msra.mxu0 %v2160
      %2195 = vmatprep.subr.bf16.mxu0 0
      %2196 = vmatpush2.bf16.msra.mxu0 %v2159
      %2197 = vmatprep.subr.bf16.mxu0 0
      %2198 = vmatpush2.bf16.msra.mxu0 %v2158
      %2199 = vmatprep.subr.bf16.mxu0 0
      %2200 = vmatpush2.bf16.msra.mxu0 %v2157
      %2201 = vmatprep.subr.bf16.mxu0 0
      %2202 = vmatpush2.bf16.msra.mxu0 %v2156
      %2203 = vmatprep.subr.bf16.mxu0 0
      %2204 = vmatpush2.bf16.msra.mxu0 %v2155
      %2205 = vmatprep.subr.bf16.mxu0 0
      %2206 = vmatpush2.bf16.msra.mxu0 %v2154
      %2207 = vmatprep.subr.bf16.mxu0 0
      %2208 = vmatpush2.bf16.msra.mxu0 %v2153
      %2209 = vmatprep.mubr.bf16.mxu0 %v2050
      %2210 = vmatmul.mubr.bf16.gmra.mxu0 %v2049
      %v2211 = vpop.f32.mrf.mxu0
      %v2212 = vadd.f32 0.0, %v2211
      %v2213 = vpop.f32.mrf.mxu0
      %v2214 = vpop.f32.mrf.mxu0
      %v2215 = vadd.f32 0.0, %v2214
      %v2216 = vpop.f32.mrf.mxu0
      %2217 = vmatprep.mubr.bf16.mxu0 %v2052
      %2218 = vmatmul.mubr.bf16.gmra.mxu0 %v2051
      %v2219 = vpop.f32.mrf.mxu0
      %v2220 = vadd.f32 0.0, %v2219
      %v2221 = vpop.f32.mrf.mxu0
      %v2222 = vpop.f32.mrf.mxu0
      %v2223 = vadd.f32 0.0, %v2222
      %v2224 = vpop.f32.mrf.mxu0
      %2225 = vmatprep.mubr.bf16.mxu0 %v2054
      %2226 = vmatmul.mubr.bf16.gmra.mxu0 %v2053
      %v2227 = vpop.f32.mrf.mxu0
      %v2228 = vadd.f32 0.0, %v2227
      %v2229 = vpop.f32.mrf.mxu0
      %v2230 = vpop.f32.mrf.mxu0
      %v2231 = vadd.f32 0.0, %v2230
      %v2232 = vpop.f32.mrf.mxu0
      %2233 = vmatprep.mubr.bf16.mxu0 %v2056
      %2234 = vmatmul.mubr.bf16.gmra.mxu0 %v2055
      %v2235 = vpop.f32.mrf.mxu0
      %v2236 = vadd.f32 0.0, %v2235
      %v2237 = vpop.f32.mrf.mxu0
      %v2238 = vpop.f32.mrf.mxu0
      %v2239 = vadd.f32 0.0, %v2238
      %v2240 = vpop.f32.mrf.mxu0
      %2241 = vmatprep.mubr.bf16.mxu0 %v2058
      %2242 = vmatmul.mubr.bf16.gmra.mxu0 %v2057
      %v2243 = vpop.f32.mrf.mxu0
      %v2244 = vadd.f32 0.0, %v2243
      %v2245 = vpop.f32.mrf.mxu0
      %v2246 = vpop.f32.mrf.mxu0
      %v2247 = vadd.f32 0.0, %v2246
      %v2248 = vpop.f32.mrf.mxu0
      %2249 = vmatprep.mubr.bf16.mxu0 %v2060
      %2250 = vmatmul.mubr.bf16.gmra.mxu0 %v2059
      %v2251 = vpop.f32.mrf.mxu0
      %v2252 = vadd.f32 0.0, %v2251
      %v2253 = vpop.f32.mrf.mxu0
      %v2254 = vpop.f32.mrf.mxu0
      %v2255 = vadd.f32 0.0, %v2254
      %v2256 = vpop.f32.mrf.mxu0
      %2257 = vmatprep.mubr.bf16.mxu0 %v2062
      %2258 = vmatmul.mubr.bf16.gmra.mxu0 %v2061
      %v2259 = vpop.f32.mrf.mxu0
      %v2260 = vadd.f32 0.0, %v2259
      %v2261 = vpop.f32.mrf.mxu0
      %v2262 = vpop.f32.mrf.mxu0
      %v2263 = vadd.f32 0.0, %v2262
      %v2264 = vpop.f32.mrf.mxu0
      %2265 = vmatprep.mubr.bf16.mxu0 %v2064
      %2266 = vmatmul.mubr.bf16.gmra.mxu0 %v2063
      %v2267 = vpop.f32.mrf.mxu0
      %v2268 = vadd.f32 0.0, %v2267
      %v2269 = vpop.f32.mrf.mxu0
      %v2270 = vpop.f32.mrf.mxu0
      %v2271 = vadd.f32 0.0, %v2270
      %v2272 = vpop.f32.mrf.mxu0
      %2273 = vdwg.mxu0
      %v2274 = vld [vmem:[%s2] sm:$0x1]
      %v2276 = vlaneseq
      %v2277 = vshrl.u32 %v2276, 7
      %v2278 = vsub.s32 0, %v2277
      %v2279 = vrot.slane %v2274, %v2278
      %v2281 = vadd.f32 %v2212, %v2279
      %v2282 = vadd.f32 %v2215, %v2279
      %v2283 = vadd.f32 %v2220, %v2279
      %v2284 = vadd.f32 %v2223, %v2279
      %v2285 = vadd.f32 %v2228, %v2279
      %v2286 = vadd.f32 %v2231, %v2279
      %v2287 = vadd.f32 %v2236, %v2279
      %v2288 = vadd.f32 %v2239, %v2279
      %v2289 = vadd.f32 %v2244, %v2279
      %v2290 = vadd.f32 %v2247, %v2279
      %v2291 = vadd.f32 %v2252, %v2279
      %v2292 = vadd.f32 %v2255, %v2279
      %v2293 = vadd.f32 %v2260, %v2279
      %v2294 = vadd.f32 %v2263, %v2279
      %v2295 = vadd.f32 %v2268, %v2279
      %v2296 = vadd.f32 %v2271, %v2279
      %v2297 = vmax.f32 %v2281, 0.0
      %v2298 = vmax.f32 %v2282, 0.0
      %v2299 = vmax.f32 %v2283, 0.0
      %v2300 = vmax.f32 %v2284, 0.0
      %v2301 = vmax.f32 %v2285, 0.0
      %v2302 = vmax.f32 %v2286, 0.0
      %v2303 = vmax.f32 %v2287, 0.0
      %v2304 = vmax.f32 %v2288, 0.0
      %v2305 = vmax.f32 %v2289, 0.0
      %v2306 = vmax.f32 %v2290, 0.0
      %v2307 = vmax.f32 %v2291, 0.0
      %v2308 = vmax.f32 %v2292, 0.0
      %v2309 = vmax.f32 %v2293, 0.0
      %v2310 = vmax.f32 %v2294, 0.0
      %v2311 = vmax.f32 %v2295, 0.0
      %v2312 = vmax.f32 %v2296, 0.0
      %v2313 = vld [vmem:[%s3] sm:$0xff]
      %v2314 = vld [vmem:[%s3 + $0x8] sm:$0xff]
      %v2315 = vmul.f32 %v2297, %v2313
      %v2316 = vmul.f32 %v2298, %v2314
      %v2317 = vmul.f32 %v2299, %v2313
      %v2318 = vmul.f32 %v2300, %v2314
      %v2319 = vmul.f32 %v2301, %v2313
      %v2320 = vmul.f32 %v2302, %v2314
      %v2321 = vmul.f32 %v2303, %v2313
      %v2322 = vmul.f32 %v2304, %v2314
      %v2323 = vmul.f32 %v2305, %v2313
      %v2324 = vmul.f32 %v2306, %v2314
      %v2325 = vmul.f32 %v2307, %v2313
      %v2326 = vmul.f32 %v2308, %v2314
      %v2327 = vmul.f32 %v2309, %v2313
      %v2328 = vmul.f32 %v2310, %v2314
      %v2329 = vmul.f32 %v2311, %v2313
      %v2330 = vmul.f32 %v2312, %v2314
      %v2331 = vmax.f32 %v2315, %v2316
      %v2332 = vrot.slane %v2331, 4
      %v2333 = vmax.f32 %v2331, %v2332
      %v2334 = vrot.slane %v2333, 2
      %v2335 = vmax.f32 %v2333, %v2334
      %v2336 = vrot.slane %v2335, 1
      %v2337 = vmax.f32 %v2335, %v2336
      %v2338 = vmax.f32 %v2317, %v2318
      %v2339 = vrot.slane %v2338, 4
      %v2340 = vmax.f32 %v2338, %v2339
      %v2341 = vrot.slane %v2340, 2
      %v2342 = vmax.f32 %v2340, %v2341
      %v2343 = vrot.slane %v2342, 1
      %v2344 = vmax.f32 %v2342, %v2343
      %v2345 = vmax.f32 %v2319, %v2320
      %v2346 = vrot.slane %v2345, 4
      %v2347 = vmax.f32 %v2345, %v2346
      %v2348 = vrot.slane %v2347, 2
      %v2349 = vmax.f32 %v2347, %v2348
      %v2350 = vrot.slane %v2349, 1
      %v2351 = vmax.f32 %v2349, %v2350
      %v2352 = vmax.f32 %v2321, %v2322
      %v2353 = vrot.slane %v2352, 4
      %v2354 = vmax.f32 %v2352, %v2353
      %v2355 = vrot.slane %v2354, 2
      %v2356 = vmax.f32 %v2354, %v2355
      %v2357 = vrot.slane %v2356, 1
      %v2358 = vmax.f32 %v2356, %v2357
      %v2359 = vmax.f32 %v2323, %v2324
      %v2360 = vrot.slane %v2359, 4
      %v2361 = vmax.f32 %v2359, %v2360
      %v2362 = vrot.slane %v2361, 2
      %v2363 = vmax.f32 %v2361, %v2362
      %v2364 = vrot.slane %v2363, 1
      %v2365 = vmax.f32 %v2363, %v2364
      %v2366 = vmax.f32 %v2325, %v2326
      %v2367 = vrot.slane %v2366, 4
      %v2368 = vmax.f32 %v2366, %v2367
      %v2369 = vrot.slane %v2368, 2
      %v2370 = vmax.f32 %v2368, %v2369
      %v2371 = vrot.slane %v2370, 1
      %v2372 = vmax.f32 %v2370, %v2371
      %v2373 = vmax.f32 %v2327, %v2328
      %v2374 = vrot.slane %v2373, 4
      %v2375 = vmax.f32 %v2373, %v2374
      %v2376 = vrot.slane %v2375, 2
      %v2377 = vmax.f32 %v2375, %v2376
      %v2378 = vrot.slane %v2377, 1
      %v2379 = vmax.f32 %v2377, %v2378
      %v2380 = vmax.f32 %v2329, %v2330
      %v2381 = vrot.slane %v2380, 4
      %v2382 = vmax.f32 %v2380, %v2381
      %v2383 = vrot.slane %v2382, 2
      %v2384 = vmax.f32 %v2382, %v2383
      %v2385 = vrot.slane %v2384, 1
      %v2386 = vmax.f32 %v2384, %v2385
      %v2387 = vpack.c.bf16 %v2337, %v2337
      %v2388 = vpack.c.bf16 %v2344, %v2344
      %v2389 = vpack.c.bf16 %v2351, %v2351
      %v2390 = vpack.c.bf16 %v2358, %v2358
      %v2391 = vpack.c.bf16 %v2365, %v2365
      %v2392 = vpack.c.bf16 %v2372, %v2372
      %v2393 = vpack.c.bf16 %v2379, %v2379
      %v2394 = vpack.c.bf16 %v2386, %v2386
      %v2395 = vld [vmem:[%s4] sm:$0xf]
      %v2396 = vld [vmem:[%s4 + $0x4] sm:$0xf]
      %v2397 = vld [vmem:[%s4 + $0x8] sm:$0xf]
      %v2398 = vld [vmem:[%s4 + $0xc] sm:$0xf]
      %v2399 = vld [vmem:[%s4 + $0x10] sm:$0xf]
      %v2400 = vld [vmem:[%s4 + $0x14] sm:$0xf]
      %v2401 = vld [vmem:[%s4 + $0x18] sm:$0xf]
      %v2402 = vld [vmem:[%s4 + $0x1c] sm:$0xf]
      %v2403 = vld [vmem:[%s4 + $0x20] sm:$0xf]
      %v2404 = vld [vmem:[%s4 + $0x24] sm:$0xf]
      %v2405 = vld [vmem:[%s4 + $0x28] sm:$0xf]
      %v2406 = vld [vmem:[%s4 + $0x2c] sm:$0xf]
      %v2407 = vld [vmem:[%s4 + $0x30] sm:$0xf]
      %v2408 = vld [vmem:[%s4 + $0x34] sm:$0xf]
      %v2409 = vld [vmem:[%s4 + $0x38] sm:$0xf]
      %v2410 = vld [vmem:[%s4 + $0x3c] sm:$0xf]
      %v2411 = vld [vmem:[%s5] sm:$0x1]
      %v2413 = vlaneseq
      %v2414 = vshrl.u32 %v2413, 7
      %v2415 = vsub.s32 0, %v2414
      %v2416 = vrot.slane %v2411, %v2415
      %v2426 = vunpack.c.l.b16 %v2387
      %v2427 = vunpack.c.l.b16 %v2388
      %v2428 = vunpack.c.l.b16 %v2389
      %v2429 = vunpack.c.l.b16 %v2390
      %v2430 = vunpack.c.l.b16 %v2391
      %v2431 = vunpack.c.l.b16 %v2392
      %v2432 = vunpack.c.l.b16 %v2393
      %v2433 = vunpack.c.l.b16 %v2394
      %vm2434 = vcmask 1041409
      %v2435 = vsel %vm2434, %v2427, %v2426
      %vm2436 = vcmask 1042434
      %v2437 = vsel %vm2436, %v2428, %v2435
      %vm2438 = vcmask 1043459
      %v2439 = vsel %vm2438, %v2429, %v2437
      %vm2440 = vcmask 1044484
      %v2441 = vsel %vm2440, %v2430, %v2439
      %vm2442 = vcmask 1045509
      %v2443 = vsel %vm2442, %v2431, %v2441
      %vm2444 = vcmask 1046534
      %v2445 = vsel %vm2444, %v2432, %v2443
      %vm2446 = vcmask 1047559
      %v2447 = vsel %vm2446, %v2433, %v2445
      %v2448 = vpack.c.b16 %v2447, %v2447
      %v2466 = vunpack.c.l.b16 %v2395
      %v2467 = vunpack.c.l.b16 %v2396
      %v2468 = vunpack.c.l.b16 %v2397
      %v2469 = vunpack.c.l.b16 %v2398
      %v2470 = vunpack.c.l.b16 %v2399
      %v2471 = vunpack.c.l.b16 %v2400
      %v2472 = vunpack.c.l.b16 %v2401
      %v2473 = vunpack.c.l.b16 %v2402
      %v2474 = vunpack.c.l.b16 %v2403
      %v2475 = vunpack.c.l.b16 %v2404
      %v2476 = vunpack.c.l.b16 %v2405
      %v2477 = vunpack.c.l.b16 %v2406
      %v2478 = vunpack.c.l.b16 %v2407
      %v2479 = vunpack.c.l.b16 %v2408
      %v2480 = vunpack.c.l.b16 %v2409
      %v2481 = vunpack.c.l.b16 %v2410
      %v2482 = vpack.c.b16 %v2467, %v2466
      %v2483 = vpack.c.b16 %v2469, %v2468
      %v2484 = vpack.c.b16 %v2471, %v2470
      %v2485 = vpack.c.b16 %v2473, %v2472
      %v2486 = vpack.c.b16 %v2475, %v2474
      %v2487 = vpack.c.b16 %v2477, %v2476
      %v2488 = vpack.c.b16 %v2479, %v2478
      %v2489 = vpack.c.b16 %v2481, %v2480
      %2498 = vmatprep.subr.bf16.mxu0 0
      %2499 = vmatpush1.bf16.msra.mxu0 %v2489
      %2500 = vmatprep.subr.bf16.mxu0 0
      %2501 = vmatpush1.bf16.msra.mxu0 %v2488
      %2502 = vmatprep.subr.bf16.mxu0 0
      %2503 = vmatpush1.bf16.msra.mxu0 %v2487
      %2504 = vmatprep.subr.bf16.mxu0 0
      %2505 = vmatpush1.bf16.msra.mxu0 %v2486
      %2506 = vmatprep.subr.bf16.mxu0 0
      %2507 = vmatpush1.bf16.msra.mxu0 %v2485
      %2508 = vmatprep.subr.bf16.mxu0 0
      %2509 = vmatpush1.bf16.msra.mxu0 %v2484
      %2510 = vmatprep.subr.bf16.mxu0 0
      %2511 = vmatpush1.bf16.msra.mxu0 %v2483
      %2512 = vmatprep.subr.bf16.mxu0 0
      %2513 = vmatpush1.bf16.msra.mxu0 %v2482
      %2514 = vmatprep.subr.bf16.mxu0 0
      %2515 = vmatpush2.bf16.msra.mxu0 0
      %2516 = vmatprep.subr.bf16.mxu0 0
      %2517 = vmatpush2.bf16.msra.mxu0 0
      %2518 = vmatprep.subr.bf16.mxu0 0
      %2519 = vmatpush2.bf16.msra.mxu0 0
      %2520 = vmatprep.subr.bf16.mxu0 0
      %2521 = vmatpush2.bf16.msra.mxu0 0
      %2522 = vmatprep.subr.bf16.mxu0 0
      %2523 = vmatpush2.bf16.msra.mxu0 0
      %2524 = vmatprep.subr.bf16.mxu0 0
      %2525 = vmatpush2.bf16.msra.mxu0 0
      %2526 = vmatprep.subr.bf16.mxu0 0
      %2527 = vmatpush2.bf16.msra.mxu0 0
      %2528 = vmatprep.subr.bf16.mxu0 0
      %2529 = vmatpush2.bf16.msra.mxu0 0
      %2530 = vmatprep.mubr.bf16.mxu0 0
      %2531 = vmatmul.mubr.bf16.gmra.mxu0 %v2448
      %v2532 = vpop.f32.mrf.mxu0
      %v2533 = vadd.f32 %v2416, %v2532
      %v2534 = vpop.f32.mrf.mxu0
      %v2535 = vpop.f32.mrf.mxu0
      %v2536 = vpop.f32.mrf.mxu0
      %2537 = vdwg.mxu0
      %2538 = vst [vmem:[%s254] sm:$0xff] %v2533
      %p2539 = scmp.lt.s32.totalorder %s17, 1
      %s2540 = scalar_select %p2539, %s17, 1
      %s2541 = smul.addr %s2540, 8
      %s2542 = scalar_lea.vmem %s6, %s2541
      // Predicated region
      $region45: #{_lambda_.1} parent=43 // pred_check
        %p2543 = pneg %p166
      $region46: #{_lambda_.1} parent=43 // pred_check_branch
        %2545 = sbr.rel (%p2543) target = $region48
      $region47: #{_lambda_.1} parent=43 // pred_region
        _
      $region48: #{_lambda_.1} parent=43 // pred_fallthru
        _
    $region44: #{_lambda_.1} parent=5 // pred_fallthru
      _
    %p2546 = scmp.le.s32.totalorder 2, %s12
    // Predicated region
    $region49: #{_lambda_.1} parent=5 // pred_check
      %p2547 = pneg %p2546
    $region50: #{_lambda_.1} parent=5 // pred_check_branch
      %2549 = sbr.rel (%p2547) target = $region52
    $region51: #{_lambda_.1} parent=5 // pred_region
      %s2550 = ssub.s32 %s12, 2
      // Predicated region
      $region53: #{_lambda_.1} parent=51 // pred_check
        %p2551 = pneg %p172
      $region54: #{_lambda_.1} parent=51 // pred_check_branch
        %2553 = sbr.rel (%p2551) target = $region56
      $region55: #{_lambda_.1} parent=51 // pred_region
        %p2554 = scmp.lt.s32.totalorder %s18, 1
        %s2555 = scalar_select %p2554, %s18, 1
        %s2556 = smul.addr %s2555, 8
        %s2557 = scalar_lea.vmem %s6, %s2556
      $region56: #{_lambda_.1} parent=51 // pred_fallthru
        _
    $region52: #{_lambda_.1} parent=5 // pred_fallthru
      _
  $region6: #{_lambda_.1} parent=0 // loop_footer
    %s16 = sadd.s32 1, %s12
  $region7: #{_lambda_.1} parent=0 // loop_footer_branch
    %11 = sbr.rel target = $region3
  $region8: #{_lambda_.1} parent=0 // loop_exit
    _

</llo_original>
